<compile_context>
chip_gen: v6e
topology: v6e:2x2x1
jax: 0.10.0
libtpu: 0.0.40
codegen_flags: <defaults>
</compile_context>

<pallas_src>
import numpy as np
import jax
import jax.numpy as jnp
from jax.experimental import pallas as pl
from jax.experimental.pallas import tpu as pltpu


# ----------------------------- Pallas kernel ------------------------------ #

def _make_resblock_kernel(H, W, n_groups, has_shortcut):
    HW = H * W
    PAD = W + 1  # enough zero cols so every 3x3 tap offset stays in-bounds

    def kernel(x_ref, t_ref, pm_ref, pin_ref, pout_ref,
               cinp_ref, coutp_ref, c1w_ref, tw_ref, c2w_ref,
               *rest):
        if has_shortcut:
            scw_ref, out_ref = rest
        else:
            (out_ref,) = rest

        f32 = jnp.float32
        bf16 = jnp.bfloat16

        xf = x_ref[0].astype(f32)                    # (Cin, HW), channels on sublanes

        # Consolidated per-channel params.
        g1w = cinp_ref[:, 0:1]                       # (Cin, 1) GroupNorm1 gamma
        g1b = cinp_ref[:, 1:2]                       # (Cin, 1) GroupNorm1 beta
        c1b = coutp_ref[:, 0:1]                      # (Cout, 1) conv1 bias
        tb = coutp_ref[:, 1:2]                       # (Cout, 1) time_emb bias
        g2w = coutp_ref[:, 2:3]                      # (Cout, 1) GroupNorm2 gamma
        g2b = coutp_ref[:, 3:4]                      # (Cout, 1) GroupNorm2 beta
        c2b = coutp_ref[:, 4:5]                      # (Cout, 1) conv2 bias
        if has_shortcut:
            scb = coutp_ref[:, 5:6]                  # (Cout, 1) shortcut bias

        def silu(v):
            # SiLU via tanh: 1 EUP op/elem instead of exp + reciprocal.
            return 0.5 * v * (1.0 + jnp.tanh(0.5 * v))

        def group_norm(v, p_ref, gamma, beta):
            # v: (C, HW) f32. p_ref: (C, C) group-broadcast matrix, pre-scaled by
            # 1/(HW * C_per_group) in the wrapper -> g = per-group [mean, E[x^2]].
            ch_sum = jnp.sum(v, axis=1, keepdims=True)               # (C, 1) lane reduce
            ch_sq = jnp.sum(v * v, axis=1, keepdims=True)            # (C, 1)
            stats = jnp.concatenate([ch_sum, ch_sq], axis=1)         # (C, 2)
            g = jnp.dot(p_ref[...], stats, preferred_element_type=f32)
            mean = g[:, 0:1]
            var = jnp.maximum(g[:, 1:2] - mean * mean, 0.0)          # guard cancellation
            rstd = jax.lax.rsqrt(var + 1e-5)
            return (v - mean) * rstd * gamma + beta

        def conv3x3(v, w_ref, b):
            # v: (Ci, HW) f32.  w_ref: (9, Co, Ci) bf16 (tap-major).
            # 3x3 "same" conv as 9 accumulating bf16 matmuls into an f32 accumulator.
            ci = v.shape[0]
            co = w_ref.shape[1]
            vb = v.astype(bf16)
            zp = jnp.zeros((ci, PAD), bf16)
            vp = jnp.concatenate([zp, vb, zp], axis=1)               # (Ci, HW + 2*PAD)
            # Pre-masked copies for ox=-1 / ox=+1 (ox=0 needs no mask).
            vp_m = vp * pm_ref[0:1, :]
            vp_p = vp * pm_ref[1:2, :]
            vps = (vp_m, vp, vp_p)                                   # index by ox + 1
            acc = jnp.zeros((co, HW), f32)
            k = 0
            for oy in (-1, 0, 1):
                for ox in (-1, 0, 1):
                    d = oy * W + ox
                    tap = vps[ox + 1][:, PAD + d: PAD + d + HW]      # (Ci, HW) bf16
                    acc = acc + jnp.dot(w_ref[k], tap,
                                        preferred_element_type=f32)
                    k += 1
            return acc + b                                           # (Co, HW)

        # norm1 -> SiLU -> conv1
        h = group_norm(xf, pin_ref, g1w, g1b)
        h = conv3x3(silu(h), c1w_ref, c1b)

        # h += time_emb(SiLU(t)), broadcast over spatial lanes
        tcol = silu(t_ref[0].astype(f32))                            # (Tc, 1)
        temb = jnp.dot(tw_ref[...], tcol, preferred_element_type=f32) + tb
        h = h + temb

        # norm2 -> SiLU -> dropout (identity in eval) -> conv2
        h = group_norm(h, pout_ref, g2w, g2b)
        h = conv3x3(silu(h), c2w_ref, c2b)

        # shortcut: 1x1 conv iff Cin != Cout, else plain identity (no matmul at all)
        if has_shortcut:
            sc = jnp.dot(scw_ref[...], xf.astype(bf16),
                         preferred_element_type=f32) + scb
        else:
            sc = xf

        out_ref[0] = (h + sc).astype(out_ref.dtype)

    return kernel


# ------------------------------- wrapper ----------------------------------- #

def _padded_col_masks(H, W):
    """(2, HW + 2*PAD) masks for ox=-1 / ox=+1, pre-shifted to SOURCE positions of the
    zero-padded activation buffer (valid for every oy since the needed mask value at
    source j depends only on (j - PAD - ox) mod W)."""
    HW = H * W
    PAD = W + 1
    L = HW + 2 * PAD
    j = np.arange(L)
    qm = (j - PAD + 1) % W        # output column for ox = -1
    qp = (j - PAD - 1) % W        # output column for ox = +1
    m = np.stack([(qm >= 1), (qp <= W - 2)], axis=0).astype(np.float32)
    return jnp.asarray(m, dtype=jnp.bfloat16)


def _group_broadcast_matrix(C, G, HW):
    """(C, C) matrix: 1/(HW*C_per_group) where two channels share a GroupNorm group."""
    cg = C // G
    idx = np.arange(C) // cg
    m = (idx[:, None] == idx[None, :]).astype(np.float32) / float(HW * cg)
    return jnp.asarray(m)


def residual_block_forward(x_nchw, t, p, n_groups):
    B, Cin, H, W = x_nchw.shape
    Cout = p["conv1_w"].shape[0]
    Tc = p["time_w"].shape[1]
    HW = H * W
    assert Cin % n_groups == 0 and Cout % n_groups == 0
    has_shortcut = Cin != Cout
    bf16 = jnp.bfloat16

    # NCHW with flattened spatial -> (B, C, HW): channels on sublanes, spatial on lanes.
    x_flat = x_nchw.reshape(B, Cin, HW)
    t_col = t.reshape(B, Tc, 1)

    pm = _padded_col_masks(H, W)                           # (2, HW + 2*(W+1))
    pin = _group_broadcast_matrix(Cin, n_groups, HW)       # (Cin, Cin), pre-scaled
    pout = _group_broadcast_matrix(Cout, n_groups, HW)     # (Cout, Cout), pre-scaled

    # conv weights (Co, Ci, 3, 3) -> (9, Co, Ci) bf16, tap-major (oy, ox) row-major.
    conv1_w = jnp.transpose(p["conv1_w"], (2, 3, 0, 1)).reshape(9, Cout, Cin).astype(bf16)
    conv2_w = jnp.transpose(p["conv2_w"], (2, 3, 0, 1)).reshape(9, Cout, Cout).astype(bf16)

    # Consolidated per-channel params (fewer DMAs / padded VMEM blocks).
    cinp = jnp.stack([p["gn1_w"], p["gn1_b"]], axis=1).astype(jnp.float32)      # (Cin, 2)
    cout_cols = [p["conv1_b"], p["time_b"], p["gn2_w"], p["gn2_b"], p["conv2_b"]]
    if has_shortcut:
        cout_cols.append(p["sc_b"])
    coutp = jnp.stack(cout_cols, axis=1).astype(jnp.float32)                    # (Cout, 5|6)

    args = [x_flat, t_col, pm, pin, pout, cinp, coutp,
            conv1_w, p["time_w"], conv2_w]
    if has_shortcut:
        args.append(p["sc_w"][:, :, 0, 0].astype(bf16))

    def full_spec(a):
        nd = a.ndim
        return pl.BlockSpec(a.shape, lambda b, _nd=nd: (0,) * _nd)

    in_specs = [
        pl.BlockSpec((1, Cin, HW), lambda b: (b, 0, 0)),   # x (per-batch block)
        pl.BlockSpec((1, Tc, 1), lambda b: (b, 0, 0)),     # t (per-batch block)
    ] + [full_spec(a) for a in args[2:]]                   # tiny constants / params

    kernel = _make_resblock_kernel(H, W, n_groups, has_shortcut)

    out = pl.pallas_call(
        kernel,
        grid=(B,),
        in_specs=in_specs,
        out_specs=pl.BlockSpec((1, Cout, HW), lambda b: (b, 0, 0)),
        out_shape=jax.ShapeDtypeStruct((B, Cout, HW), jnp.float32),
        compiler_params=pltpu.CompilerParams(
            dimension_semantics=("parallel",),
            vmem_limit_bytes=32 * 1024 * 1024),
    )(*args)

    return out.reshape(B, Cout, H, W)


# --------------------------- pure-JAX reference ---------------------------- #

def reference_forward(x, t, p, n_groups):
    def silu(v):
        return v * jax.nn.sigmoid(v)

    def gn(v, w, b):
        N, C, H, W = v.shape
        g = n_groups
        vg = v.reshape(N, g, C // g, H, W)
        mean = vg.mean(axis=(2, 3, 4), keepdims=True)
        var = vg.var(axis=(2, 3, 4), keepdims=True)
        vn = ((vg - mean) / jnp.sqrt(var + 1e-5)).reshape(N, C, H, W)
        return vn * w[None, :, None, None] + b[None, :, None, None]

    def conv(v, w, b, pad):
        y = jax.lax.conv_general_dilated(
            v, w, window_strides=(1, 1), padding=((pad, pad), (pad, pad)),
            dimension_numbers=("NCHW", "OIHW", "NCHW"))
        return y + b[None, :, None, None]

    h = conv(silu(gn(x, p["gn1_w"], p["gn1_b"])), p["conv1_w"], p["conv1_b"], 1)
    temb = silu(t) @ p["time_w"].T + p["time_b"]
    h = h + temb[:, :, None, None]
    h = conv(silu(gn(h, p["gn2_w"], p["gn2_b"])), p["conv2_w"], p["conv2_b"], 1)
    if p["conv1_w"].shape[0] != p["conv1_w"].shape[1]:
        sc = conv(x, p["sc_w"], p["sc_b"], 0)
    else:
        sc = x
    return h + sc


# --------------------------------- main ------------------------------------ #

def _make_params(key, cin, cout, tc):
    ks = jax.random.split(key, 12)
    p = {
        "gn1_w": 1.0 + 0.1 * jax.random.normal(ks[0], (cin,), jnp.float32),
        "gn1_b": 0.1 * jax.random.normal(ks[1], (cin,), jnp.float32),
        "conv1_w": 0.1 * jax.random.normal(ks[2], (cout, cin, 3, 3), jnp.float32),
        "conv1_b": 0.1 * jax.random.normal(ks[3], (cout,), jnp.float32),
        "time_w": 0.1 * jax.random.normal(ks[4], (cout, tc), jnp.float32),
        "time_b": 0.1 * jax.random.normal(ks[5], (cout,), jnp.float32),
        "gn2_w": 1.0 + 0.1 * jax.random.normal(ks[6], (cout,), jnp.float32),
        "gn2_b": 0.1 * jax.random.normal(ks[7], (cout,), jnp.float32),
        "conv2_w": 0.1 * jax.random.normal(ks[8], (cout, cout, 3, 3), jnp.float32),
        "conv2_b": 0.1 * jax.random.normal(ks[9], (cout,), jnp.float32),
    }
    if cin != cout:
        p["sc_w"] = 0.1 * jax.random.normal(ks[10], (cout, cin, 1, 1), jnp.float32)
        p["sc_b"] = 0.1 * jax.random.normal(ks[11], (cout,), jnp.float32)
    return p


if __name__ == "__main__":
    key = jax.random.PRNGKey(0)
    k1, k2, k3, k4, k5, k6 = jax.random.split(key, 6)

    # Conv matmul operands are bf16 (f32 accumulation) -> bf16-level tolerance vs the
    # pure-f32 reference.
    ATOL = 2e-2
    RTOL = 2e-2

    # Case 1: channel-changing block (exercises the 1x1-conv shortcut path).
    B, Cin, Cout, Tc, H, W, G = 2, 8, 16, 32, 16, 16, 4
    p1 = _make_params(k1, Cin, Cout, Tc)
    x1 = jax.random.normal(k2, (B, Cin, H, W), jnp.float32)
    t1 = jax.random.normal(k3, (B, Tc), jnp.float32)
    out1 = jax.block_until_ready(residual_block_forward(x1, t1, p1, G))
    ref1 = reference_forward(x1, t1, p1, G)
    assert out1.shape == (B, Cout, H, W)
    if not bool(jnp.allclose(out1, ref1, atol=ATOL, rtol=RTOL)):
        raise AssertionError("Pallas kernel mismatch vs JAX reference (shortcut case)")

    # Case 2: identity-shortcut block (Cin == Cout, shortcut matmul specialized away).
    B2, C2, Tc2, H2, W2, G2 = 2, 16, 32, 16, 16, 8
    p2 = _make_params(k4, C2, C2, Tc2)
    x2 = jax.random.normal(k5, (B2, C2, H2, W2), jnp.float32)
    t2 = jax.random.normal(k6, (B2, Tc2), jnp.float32)
    out2 = jax.block_until_ready(residual_block_forward(x2, t2, p2, G2))
    ref2 = reference_forward(x2, t2, p2, G2)
    assert out2.shape == (B2, C2, H2, W2)
    if not bool(jnp.allclose(out2, ref2, atol=ATOL, rtol=RTOL)):
        raise AssertionError("Pallas kernel mismatch vs JAX reference (identity case)")

    print("KERNEL_OK")
</pallas_src>

<mosaic_0001>
module attributes {stable_mosaic.version = 11 : i64} {
  func.func @kernel(%arg0: i32, %arg1: memref<1x8x256xf32, #tpu.memory_space<vmem>>, %arg2: memref<1x32x1xf32, #tpu.memory_space<vmem>>, %arg3: memref<2x290xbf16, #tpu.memory_space<vmem>>, %arg4: memref<8x8xf32, #tpu.memory_space<vmem>>, %arg5: memref<16x16xf32, #tpu.memory_space<vmem>>, %arg6: memref<8x2xf32, #tpu.memory_space<vmem>>, %arg7: memref<16x6xf32, #tpu.memory_space<vmem>>, %arg8: memref<9x16x8xbf16, #tpu.memory_space<vmem>>, %arg9: memref<16x32xf32, #tpu.memory_space<vmem>>, %arg10: memref<9x16x16xbf16, #tpu.memory_space<vmem>>, %arg11: memref<16x8xbf16, #tpu.memory_space<vmem>>, %arg12: memref<1x16x256xf32, #tpu.memory_space<vmem>>) attributes {dimension_semantics = [#tpu.dimension_semantics<parallel>], iteration_bounds = array<i64: 2>, scalar_prefetch = 0 : i64, scratch_operands = 0 : i64, tpu.core_type = #tpu.core_type<tc>, window_params = [{transform_indices = @transform_0, window_bounds = array<i64: 1, 8, 256>}, {transform_indices = @transform_1, window_bounds = array<i64: 1, 32, 1>}, {pipeline_mode = #tpu.pipeline_mode<synchronous>, transform_indices = @transform_2, window_bounds = array<i64: 2, 290>}, {pipeline_mode = #tpu.pipeline_mode<synchronous>, transform_indices = @transform_3, window_bounds = array<i64: 8, 8>}, {pipeline_mode = #tpu.pipeline_mode<synchronous>, transform_indices = @transform_4, window_bounds = array<i64: 16, 16>}, {pipeline_mode = #tpu.pipeline_mode<synchronous>, transform_indices = @transform_5, window_bounds = array<i64: 8, 2>}, {pipeline_mode = #tpu.pipeline_mode<synchronous>, transform_indices = @transform_6, window_bounds = array<i64: 16, 6>}, {pipeline_mode = #tpu.pipeline_mode<synchronous>, transform_indices = @transform_7, window_bounds = array<i64: 9, 16, 8>}, {pipeline_mode = #tpu.pipeline_mode<synchronous>, transform_indices = @transform_8, window_bounds = array<i64: 16, 32>}, {pipeline_mode = #tpu.pipeline_mode<synchronous>, transform_indices = @transform_9, window_bounds = array<i64: 9, 16, 16>}, {pipeline_mode = #tpu.pipeline_mode<synchronous>, transform_indices = @transform_10, window_bounds = array<i64: 16, 8>}, {transform_indices = @transform_11, window_bounds = array<i64: 1, 16, 256>}]} {
    %c0 = arith.constant 0 : index
    %c0_0 = arith.constant 0 : index
    %c0_1 = arith.constant 0 : index
    %0 = vector.load %arg1[%c0, %c0_0, %c0_1] : memref<1x8x256xf32, #tpu.memory_space<vmem>>, vector<1x8x256xf32>
    %1 = vector.shape_cast %0 : vector<1x8x256xf32> to vector<8x256xf32>
    %c0_2 = arith.constant 0 : index
    %c0_3 = arith.constant 0 : index
    %2 = vector.load %arg6[%c0_2, %c0_3] : memref<8x2xf32, #tpu.memory_space<vmem>>, vector<8x1xf32>
    %c0_4 = arith.constant 0 : index
    %c1 = arith.constant 1 : index
    %3 = vector.load %arg6[%c0_4, %c1] : memref<8x2xf32, #tpu.memory_space<vmem>>, vector<8x1xf32>
    %c0_5 = arith.constant 0 : index
    %c0_6 = arith.constant 0 : index
    %4 = vector.load %arg7[%c0_5, %c0_6] : memref<16x6xf32, #tpu.memory_space<vmem>>, vector<16x1xf32>
    %c0_7 = arith.constant 0 : index
    %c1_8 = arith.constant 1 : index
    %5 = vector.load %arg7[%c0_7, %c1_8] : memref<16x6xf32, #tpu.memory_space<vmem>>, vector<16x1xf32>
    %c0_9 = arith.constant 0 : index
    %c2 = arith.constant 2 : index
    %6 = vector.load %arg7[%c0_9, %c2] : memref<16x6xf32, #tpu.memory_space<vmem>>, vector<16x1xf32>
    %c0_10 = arith.constant 0 : index
    %c3 = arith.constant 3 : index
    %7 = vector.load %arg7[%c0_10, %c3] : memref<16x6xf32, #tpu.memory_space<vmem>>, vector<16x1xf32>
    %c0_11 = arith.constant 0 : index
    %c4 = arith.constant 4 : index
    %8 = vector.load %arg7[%c0_11, %c4] : memref<16x6xf32, #tpu.memory_space<vmem>>, vector<16x1xf32>
    %c0_12 = arith.constant 0 : index
    %c5 = arith.constant 5 : index
    %9 = vector.load %arg7[%c0_12, %c5] : memref<16x6xf32, #tpu.memory_space<vmem>>, vector<16x1xf32>
    %cst = arith.constant dense<0.000000e+00> : vector<8xf32>
    %10 = vector.multi_reduction <add>, %1, %cst [1] : vector<8x256xf32> to vector<8xf32>
    %11 = vector.shape_cast %10 : vector<8xf32> to vector<8x1xf32>
    %12 = arith.mulf %1, %1 : vector<8x256xf32>
    %cst_13 = arith.constant dense<0.000000e+00> : vector<8xf32>
    %13 = vector.multi_reduction <add>, %12, %cst_13 [1] : vector<8x256xf32> to vector<8xf32>
    %14 = vector.shape_cast %13 : vector<8xf32> to vector<8x1xf32>
    %15 = tpu.concatenate %11, %14 in 1 : vector<8x1xf32>, vector<8x1xf32> -> vector<8x2xf32>
    %c0_14 = arith.constant 0 : index
    %c0_15 = arith.constant 0 : index
    %16 = vector.load %arg4[%c0_14, %c0_15] : memref<8x8xf32, #tpu.memory_space<vmem>>, vector<8x8xf32>
    %cst_16 = arith.constant dense<0.000000e+00> : vector<8x2xf32>
    %17 = tpu.matmul %16, %15, %cst_16 {dimension_numbers = #tpu.dot_dimension_numbers<[1], [0], [0], [1], [0, 0, 1, 1], [], []>} : vector<8x8xf32>, vector<8x2xf32>, vector<8x2xf32> -> vector<8x2xf32>
    %18 = vector.extract_strided_slice %17 {offsets = [0, 0], sizes = [8, 1], strides = [1, 1]} : vector<8x2xf32> to vector<8x1xf32>
    %19 = vector.extract_strided_slice %17 {offsets = [0, 1], sizes = [8, 1], strides = [1, 1]} : vector<8x2xf32> to vector<8x1xf32>
    %20 = arith.mulf %18, %18 : vector<8x1xf32>
    %21 = arith.subf %19, %20 : vector<8x1xf32>
    %cst_17 = arith.constant 0.000000e+00 : f32
    %22 = vector.broadcast %cst_17 : f32 to vector<8x1xf32>
    %23 = arith.maximumf %21, %22 : vector<8x1xf32>
    %cst_18 = arith.constant 9.99999974E-6 : f32
    %24 = vector.broadcast %cst_18 : f32 to vector<8x1xf32>
    %25 = arith.addf %23, %24 : vector<8x1xf32>
    %26 = math.rsqrt %25 : vector<8x1xf32>
    %27 = vector.broadcast %18 : vector<8x1xf32> to vector<8x256xf32>
    %28 = arith.subf %1, %27 : vector<8x256xf32>
    %29 = vector.broadcast %26 : vector<8x1xf32> to vector<8x256xf32>
    %30 = arith.mulf %28, %29 : vector<8x256xf32>
    %31 = vector.broadcast %2 : vector<8x1xf32> to vector<8x256xf32>
    %32 = arith.mulf %30, %31 : vector<8x256xf32>
    %33 = vector.broadcast %3 : vector<8x1xf32> to vector<8x256xf32>
    %34 = arith.addf %32, %33 : vector<8x256xf32>
    %cst_19 = arith.constant 5.000000e-01 : f32
    %35 = vector.broadcast %cst_19 : f32 to vector<8x256xf32>
    %36 = arith.mulf %35, %34 : vector<8x256xf32>
    %cst_20 = arith.constant 5.000000e-01 : f32
    %37 = vector.broadcast %cst_20 : f32 to vector<8x256xf32>
    %38 = arith.mulf %37, %34 : vector<8x256xf32>
    %39 = math.tanh %38 : vector<8x256xf32>
    %cst_21 = arith.constant 1.000000e+00 : f32
    %40 = vector.broadcast %cst_21 : f32 to vector<8x256xf32>
    %41 = arith.addf %40, %39 : vector<8x256xf32>
    %42 = arith.mulf %36, %41 : vector<8x256xf32>
    %43 = arith.truncf %42 : vector<8x256xf32> to vector<8x256xbf16>
    %cst_22 = arith.constant 0.000000e+00 : bf16
    %44 = vector.broadcast %cst_22 : bf16 to vector<8x17xbf16>
    %45 = tpu.concatenate %44, %43, %44 in 1 : vector<8x17xbf16>, vector<8x256xbf16>, vector<8x17xbf16> -> vector<8x290xbf16>
    %c0_23 = arith.constant 0 : index
    %c0_24 = arith.constant 0 : index
    %46 = vector.load %arg3[%c0_23, %c0_24] : memref<2x290xbf16, #tpu.memory_space<vmem>>, vector<1x290xbf16>
    %47 = vector.broadcast %46 : vector<1x290xbf16> to vector<8x290xbf16>
    %48 = arith.mulf %45, %47 : vector<8x290xbf16>
    %c1_25 = arith.constant 1 : index
    %c0_26 = arith.constant 0 : index
    %49 = vector.load %arg3[%c1_25, %c0_26] : memref<2x290xbf16, #tpu.memory_space<vmem>>, vector<1x290xbf16>
    %50 = vector.broadcast %49 : vector<1x290xbf16> to vector<8x290xbf16>
    %51 = arith.mulf %45, %50 : vector<8x290xbf16>
    %cst_27 = arith.constant 0.000000e+00 : f32
    %52 = vector.broadcast %cst_27 : f32 to vector<16x256xf32>
    %53 = vector.extract_strided_slice %48 {offsets = [0, 0], sizes = [8, 256], strides = [1, 1]} : vector<8x290xbf16> to vector<8x256xbf16>
    %c0_28 = arith.constant 0 : index
    %c0_29 = arith.constant 0 : index
    %c0_30 = arith.constant 0 : index
    %54 = vector.load %arg8[%c0_28, %c0_29, %c0_30] : memref<9x16x8xbf16, #tpu.memory_space<vmem>>, vector<1x16x8xbf16>
    %55 = vector.shape_cast %54 : vector<1x16x8xbf16> to vector<16x8xbf16>
    %cst_31 = arith.constant dense<0.000000e+00> : vector<16x256xf32>
    %56 = tpu.matmul %55, %53, %cst_31 {dimension_numbers = #tpu.dot_dimension_numbers<[1], [0], [0], [1], [0, 0, 1, 1], [], []>} : vector<16x8xbf16>, vector<8x256xbf16>, vector<16x256xf32> -> vector<16x256xf32>
    %57 = arith.addf %52, %56 : vector<16x256xf32>
    %58 = vector.extract_strided_slice %45 {offsets = [0, 1], sizes = [8, 256], strides = [1, 1]} : vector<8x290xbf16> to vector<8x256xbf16>
    %c1_32 = arith.constant 1 : index
    %c0_33 = arith.constant 0 : index
    %c0_34 = arith.constant 0 : index
    %59 = vector.load %arg8[%c1_32, %c0_33, %c0_34] : memref<9x16x8xbf16, #tpu.memory_space<vmem>>, vector<1x16x8xbf16>
    %60 = vector.shape_cast %59 : vector<1x16x8xbf16> to vector<16x8xbf16>
    %cst_35 = arith.constant dense<0.000000e+00> : vector<16x256xf32>
    %61 = tpu.matmul %60, %58, %cst_35 {dimension_numbers = #tpu.dot_dimension_numbers<[1], [0], [0], [1], [0, 0, 1, 1], [], []>} : vector<16x8xbf16>, vector<8x256xbf16>, vector<16x256xf32> -> vector<16x256xf32>
    %62 = arith.addf %57, %61 : vector<16x256xf32>
    %63 = vector.extract_strided_slice %51 {offsets = [0, 2], sizes = [8, 256], strides = [1, 1]} : vector<8x290xbf16> to vector<8x256xbf16>
    %c2_36 = arith.constant 2 : index
    %c0_37 = arith.constant 0 : index
    %c0_38 = arith.constant 0 : index
    %64 = vector.load %arg8[%c2_36, %c0_37, %c0_38] : memref<9x16x8xbf16, #tpu.memory_space<vmem>>, vector<1x16x8xbf16>
    %65 = vector.shape_cast %64 : vector<1x16x8xbf16> to vector<16x8xbf16>
    %cst_39 = arith.constant dense<0.000000e+00> : vector<16x256xf32>
    %66 = tpu.matmul %65, %63, %cst_39 {dimension_numbers = #tpu.dot_dimension_numbers<[1], [0], [0], [1], [0, 0, 1, 1], [], []>} : vector<16x8xbf16>, vector<8x256xbf16>, vector<16x256xf32> -> vector<16x256xf32>
    %67 = arith.addf %62, %66 : vector<16x256xf32>
    %68 = vector.extract_strided_slice %48 {offsets = [0, 16], sizes = [8, 256], strides = [1, 1]} : vector<8x290xbf16> to vector<8x256xbf16>
    %c3_40 = arith.constant 3 : index
    %c0_41 = arith.constant 0 : index
    %c0_42 = arith.constant 0 : index
    %69 = vector.load %arg8[%c3_40, %c0_41, %c0_42] : memref<9x16x8xbf16, #tpu.memory_space<vmem>>, vector<1x16x8xbf16>
    %70 = vector.shape_cast %69 : vector<1x16x8xbf16> to vector<16x8xbf16>
    %cst_43 = arith.constant dense<0.000000e+00> : vector<16x256xf32>
    %71 = tpu.matmul %70, %68, %cst_43 {dimension_numbers = #tpu.dot_dimension_numbers<[1], [0], [0], [1], [0, 0, 1, 1], [], []>} : vector<16x8xbf16>, vector<8x256xbf16>, vector<16x256xf32> -> vector<16x256xf32>
    %72 = arith.addf %67, %71 : vector<16x256xf32>
    %73 = vector.extract_strided_slice %45 {offsets = [0, 17], sizes = [8, 256], strides = [1, 1]} : vector<8x290xbf16> to vector<8x256xbf16>
    %c4_44 = arith.constant 4 : index
    %c0_45 = arith.constant 0 : index
    %c0_46 = arith.constant 0 : index
    %74 = vector.load %arg8[%c4_44, %c0_45, %c0_46] : memref<9x16x8xbf16, #tpu.memory_space<vmem>>, vector<1x16x8xbf16>
    %75 = vector.shape_cast %74 : vector<1x16x8xbf16> to vector<16x8xbf16>
    %cst_47 = arith.constant dense<0.000000e+00> : vector<16x256xf32>
    %76 = tpu.matmul %75, %73, %cst_47 {dimension_numbers = #tpu.dot_dimension_numbers<[1], [0], [0], [1], [0, 0, 1, 1], [], []>} : vector<16x8xbf16>, vector<8x256xbf16>, vector<16x256xf32> -> vector<16x256xf32>
    %77 = arith.addf %72, %76 : vector<16x256xf32>
    %78 = vector.extract_strided_slice %51 {offsets = [0, 18], sizes = [8, 256], strides = [1, 1]} : vector<8x290xbf16> to vector<8x256xbf16>
    %c5_48 = arith.constant 5 : index
    %c0_49 = arith.constant 0 : index
    %c0_50 = arith.constant 0 : index
    %79 = vector.load %arg8[%c5_48, %c0_49, %c0_50] : memref<9x16x8xbf16, #tpu.memory_space<vmem>>, vector<1x16x8xbf16>
    %80 = vector.shape_cast %79 : vector<1x16x8xbf16> to vector<16x8xbf16>
    %cst_51 = arith.constant dense<0.000000e+00> : vector<16x256xf32>
    %81 = tpu.matmul %80, %78, %cst_51 {dimension_numbers = #tpu.dot_dimension_numbers<[1], [0], [0], [1], [0, 0, 1, 1], [], []>} : vector<16x8xbf16>, vector<8x256xbf16>, vector<16x256xf32> -> vector<16x256xf32>
    %82 = arith.addf %77, %81 : vector<16x256xf32>
    %83 = vector.extract_strided_slice %48 {offsets = [0, 32], sizes = [8, 256], strides = [1, 1]} : vector<8x290xbf16> to vector<8x256xbf16>
    %c6 = arith.constant 6 : index
    %c0_52 = arith.constant 0 : index
    %c0_53 = arith.constant 0 : index
    %84 = vector.load %arg8[%c6, %c0_52, %c0_53] : memref<9x16x8xbf16, #tpu.memory_space<vmem>>, vector<1x16x8xbf16>
    %85 = vector.shape_cast %84 : vector<1x16x8xbf16> to vector<16x8xbf16>
    %cst_54 = arith.constant dense<0.000000e+00> : vector<16x256xf32>
    %86 = tpu.matmul %85, %83, %cst_54 {dimension_numbers = #tpu.dot_dimension_numbers<[1], [0], [0], [1], [0, 0, 1, 1], [], []>} : vector<16x8xbf16>, vector<8x256xbf16>, vector<16x256xf32> -> vector<16x256xf32>
    %87 = arith.addf %82, %86 : vector<16x256xf32>
    %88 = vector.extract_strided_slice %45 {offsets = [0, 33], sizes = [8, 256], strides = [1, 1]} : vector<8x290xbf16> to vector<8x256xbf16>
    %c7 = arith.constant 7 : index
    %c0_55 = arith.constant 0 : index
    %c0_56 = arith.constant 0 : index
    %89 = vector.load %arg8[%c7, %c0_55, %c0_56] : memref<9x16x8xbf16, #tpu.memory_space<vmem>>, vector<1x16x8xbf16>
    %90 = vector.shape_cast %89 : vector<1x16x8xbf16> to vector<16x8xbf16>
    %cst_57 = arith.constant dense<0.000000e+00> : vector<16x256xf32>
    %91 = tpu.matmul %90, %88, %cst_57 {dimension_numbers = #tpu.dot_dimension_numbers<[1], [0], [0], [1], [0, 0, 1, 1], [], []>} : vector<16x8xbf16>, vector<8x256xbf16>, vector<16x256xf32> -> vector<16x256xf32>
    %92 = arith.addf %87, %91 : vector<16x256xf32>
    %93 = vector.extract_strided_slice %51 {offsets = [0, 34], sizes = [8, 256], strides = [1, 1]} : vector<8x290xbf16> to vector<8x256xbf16>
    %c8 = arith.constant 8 : index
    %c0_58 = arith.constant 0 : index
    %c0_59 = arith.constant 0 : index
    %94 = vector.load %arg8[%c8, %c0_58, %c0_59] : memref<9x16x8xbf16, #tpu.memory_space<vmem>>, vector<1x16x8xbf16>
    %95 = vector.shape_cast %94 : vector<1x16x8xbf16> to vector<16x8xbf16>
    %cst_60 = arith.constant dense<0.000000e+00> : vector<16x256xf32>
    %96 = tpu.matmul %95, %93, %cst_60 {dimension_numbers = #tpu.dot_dimension_numbers<[1], [0], [0], [1], [0, 0, 1, 1], [], []>} : vector<16x8xbf16>, vector<8x256xbf16>, vector<16x256xf32> -> vector<16x256xf32>
    %97 = arith.addf %92, %96 : vector<16x256xf32>
    %98 = vector.broadcast %4 : vector<16x1xf32> to vector<16x256xf32>
    %99 = arith.addf %97, %98 : vector<16x256xf32>
    %c0_61 = arith.constant 0 : index
    %c0_62 = arith.constant 0 : index
    %c0_63 = arith.constant 0 : index
    %100 = vector.load %arg2[%c0_61, %c0_62, %c0_63] : memref<1x32x1xf32, #tpu.memory_space<vmem>>, vector<1x32x1xf32>
    %101 = vector.shape_cast %100 : vector<1x32x1xf32> to vector<32x1xf32>
    %cst_64 = arith.constant 5.000000e-01 : f32
    %102 = vector.broadcast %cst_64 : f32 to vector<32x1xf32>
    %103 = arith.mulf %102, %101 : vector<32x1xf32>
    %cst_65 = arith.constant 5.000000e-01 : f32
    %104 = vector.broadcast %cst_65 : f32 to vector<32x1xf32>
    %105 = arith.mulf %104, %101 : vector<32x1xf32>
    %106 = math.tanh %105 : vector<32x1xf32>
    %cst_66 = arith.constant 1.000000e+00 : f32
    %107 = vector.broadcast %cst_66 : f32 to vector<32x1xf32>
    %108 = arith.addf %107, %106 : vector<32x1xf32>
    %109 = arith.mulf %103, %108 : vector<32x1xf32>
    %c0_67 = arith.constant 0 : index
    %c0_68 = arith.constant 0 : index
    %110 = vector.load %arg9[%c0_67, %c0_68] : memref<16x32xf32, #tpu.memory_space<vmem>>, vector<16x32xf32>
    %cst_69 = arith.constant dense<0.000000e+00> : vector<16x1xf32>
    %111 = tpu.matmul %110, %109, %cst_69 {dimension_numbers = #tpu.dot_dimension_numbers<[1], [0], [0], [1], [0, 0, 1, 1], [], []>} : vector<16x32xf32>, vector<32x1xf32>, vector<16x1xf32> -> vector<16x1xf32>
    %112 = arith.addf %111, %5 : vector<16x1xf32>
    %113 = vector.broadcast %112 : vector<16x1xf32> to vector<16x256xf32>
    %114 = arith.addf %99, %113 : vector<16x256xf32>
    %cst_70 = arith.constant dense<0.000000e+00> : vector<16xf32>
    %115 = vector.multi_reduction <add>, %114, %cst_70 [1] : vector<16x256xf32> to vector<16xf32>
    %116 = vector.shape_cast %115 : vector<16xf32> to vector<16x1xf32>
    %117 = arith.mulf %114, %114 : vector<16x256xf32>
    %cst_71 = arith.constant dense<0.000000e+00> : vector<16xf32>
    %118 = vector.multi_reduction <add>, %117, %cst_71 [1] : vector<16x256xf32> to vector<16xf32>
    %119 = vector.shape_cast %118 : vector<16xf32> to vector<16x1xf32>
    %120 = tpu.concatenate %116, %119 in 1 : vector<16x1xf32>, vector<16x1xf32> -> vector<16x2xf32>
    %c0_72 = arith.constant 0 : index
    %c0_73 = arith.constant 0 : index
    %121 = vector.load %arg5[%c0_72, %c0_73] : memref<16x16xf32, #tpu.memory_space<vmem>>, vector<16x16xf32>
    %cst_74 = arith.constant dense<0.000000e+00> : vector<16x2xf32>
    %122 = tpu.matmul %121, %120, %cst_74 {dimension_numbers = #tpu.dot_dimension_numbers<[1], [0], [0], [1], [0, 0, 1, 1], [], []>} : vector<16x16xf32>, vector<16x2xf32>, vector<16x2xf32> -> vector<16x2xf32>
    %123 = vector.extract_strided_slice %122 {offsets = [0, 0], sizes = [16, 1], strides = [1, 1]} : vector<16x2xf32> to vector<16x1xf32>
    %124 = vector.extract_strided_slice %122 {offsets = [0, 1], sizes = [16, 1], strides = [1, 1]} : vector<16x2xf32> to vector<16x1xf32>
    %125 = arith.mulf %123, %123 : vector<16x1xf32>
    %126 = arith.subf %124, %125 : vector<16x1xf32>
    %cst_75 = arith.constant 0.000000e+00 : f32
    %127 = vector.broadcast %cst_75 : f32 to vector<16x1xf32>
    %128 = arith.maximumf %126, %127 : vector<16x1xf32>
    %cst_76 = arith.constant 9.99999974E-6 : f32
    %129 = vector.broadcast %cst_76 : f32 to vector<16x1xf32>
    %130 = arith.addf %128, %129 : vector<16x1xf32>
    %131 = math.rsqrt %130 : vector<16x1xf32>
    %132 = vector.broadcast %123 : vector<16x1xf32> to vector<16x256xf32>
    %133 = arith.subf %114, %132 : vector<16x256xf32>
    %134 = vector.broadcast %131 : vector<16x1xf32> to vector<16x256xf32>
    %135 = arith.mulf %133, %134 : vector<16x256xf32>
    %136 = vector.broadcast %6 : vector<16x1xf32> to vector<16x256xf32>
    %137 = arith.mulf %135, %136 : vector<16x256xf32>
    %138 = vector.broadcast %7 : vector<16x1xf32> to vector<16x256xf32>
    %139 = arith.addf %137, %138 : vector<16x256xf32>
    %cst_77 = arith.constant 5.000000e-01 : f32
    %140 = vector.broadcast %cst_77 : f32 to vector<16x256xf32>
    %141 = arith.mulf %140, %139 : vector<16x256xf32>
    %cst_78 = arith.constant 5.000000e-01 : f32
    %142 = vector.broadcast %cst_78 : f32 to vector<16x256xf32>
    %143 = arith.mulf %142, %139 : vector<16x256xf32>
    %144 = math.tanh %143 : vector<16x256xf32>
    %cst_79 = arith.constant 1.000000e+00 : f32
    %145 = vector.broadcast %cst_79 : f32 to vector<16x256xf32>
    %146 = arith.addf %145, %144 : vector<16x256xf32>
    %147 = arith.mulf %141, %146 : vector<16x256xf32>
    %148 = arith.truncf %147 : vector<16x256xf32> to vector<16x256xbf16>
    %cst_80 = arith.constant 0.000000e+00 : bf16
    %149 = vector.broadcast %cst_80 : bf16 to vector<16x17xbf16>
    %150 = tpu.concatenate %149, %148, %149 in 1 : vector<16x17xbf16>, vector<16x256xbf16>, vector<16x17xbf16> -> vector<16x290xbf16>
    %c0_81 = arith.constant 0 : index
    %c0_82 = arith.constant 0 : index
    %151 = vector.load %arg3[%c0_81, %c0_82] : memref<2x290xbf16, #tpu.memory_space<vmem>>, vector<1x290xbf16>
    %152 = vector.broadcast %151 : vector<1x290xbf16> to vector<16x290xbf16>
    %153 = arith.mulf %150, %152 : vector<16x290xbf16>
    %c1_83 = arith.constant 1 : index
    %c0_84 = arith.constant 0 : index
    %154 = vector.load %arg3[%c1_83, %c0_84] : memref<2x290xbf16, #tpu.memory_space<vmem>>, vector<1x290xbf16>
    %155 = vector.broadcast %154 : vector<1x290xbf16> to vector<16x290xbf16>
    %156 = arith.mulf %150, %155 : vector<16x290xbf16>
    %cst_85 = arith.constant 0.000000e+00 : f32
    %157 = vector.broadcast %cst_85 : f32 to vector<16x256xf32>
    %158 = vector.extract_strided_slice %153 {offsets = [0, 0], sizes = [16, 256], strides = [1, 1]} : vector<16x290xbf16> to vector<16x256xbf16>
    %c0_86 = arith.constant 0 : index
    %c0_87 = arith.constant 0 : index
    %c0_88 = arith.constant 0 : index
    %159 = vector.load %arg10[%c0_86, %c0_87, %c0_88] : memref<9x16x16xbf16, #tpu.memory_space<vmem>>, vector<1x16x16xbf16>
    %160 = vector.shape_cast %159 : vector<1x16x16xbf16> to vector<16x16xbf16>
    %cst_89 = arith.constant dense<0.000000e+00> : vector<16x256xf32>
    %161 = tpu.matmul %160, %158, %cst_89 {dimension_numbers = #tpu.dot_dimension_numbers<[1], [0], [0], [1], [0, 0, 1, 1], [], []>} : vector<16x16xbf16>, vector<16x256xbf16>, vector<16x256xf32> -> vector<16x256xf32>
    %162 = arith.addf %157, %161 : vector<16x256xf32>
    %163 = vector.extract_strided_slice %150 {offsets = [0, 1], sizes = [16, 256], strides = [1, 1]} : vector<16x290xbf16> to vector<16x256xbf16>
    %c1_90 = arith.constant 1 : index
    %c0_91 = arith.constant 0 : index
    %c0_92 = arith.constant 0 : index
    %164 = vector.load %arg10[%c1_90, %c0_91, %c0_92] : memref<9x16x16xbf16, #tpu.memory_space<vmem>>, vector<1x16x16xbf16>
    %165 = vector.shape_cast %164 : vector<1x16x16xbf16> to vector<16x16xbf16>
    %cst_93 = arith.constant dense<0.000000e+00> : vector<16x256xf32>
    %166 = tpu.matmul %165, %163, %cst_93 {dimension_numbers = #tpu.dot_dimension_numbers<[1], [0], [0], [1], [0, 0, 1, 1], [], []>} : vector<16x16xbf16>, vector<16x256xbf16>, vector<16x256xf32> -> vector<16x256xf32>
    %167 = arith.addf %162, %166 : vector<16x256xf32>
    %168 = vector.extract_strided_slice %156 {offsets = [0, 2], sizes = [16, 256], strides = [1, 1]} : vector<16x290xbf16> to vector<16x256xbf16>
    %c2_94 = arith.constant 2 : index
    %c0_95 = arith.constant 0 : index
    %c0_96 = arith.constant 0 : index
    %169 = vector.load %arg10[%c2_94, %c0_95, %c0_96] : memref<9x16x16xbf16, #tpu.memory_space<vmem>>, vector<1x16x16xbf16>
    %170 = vector.shape_cast %169 : vector<1x16x16xbf16> to vector<16x16xbf16>
    %cst_97 = arith.constant dense<0.000000e+00> : vector<16x256xf32>
    %171 = tpu.matmul %170, %168, %cst_97 {dimension_numbers = #tpu.dot_dimension_numbers<[1], [0], [0], [1], [0, 0, 1, 1], [], []>} : vector<16x16xbf16>, vector<16x256xbf16>, vector<16x256xf32> -> vector<16x256xf32>
    %172 = arith.addf %167, %171 : vector<16x256xf32>
    %173 = vector.extract_strided_slice %153 {offsets = [0, 16], sizes = [16, 256], strides = [1, 1]} : vector<16x290xbf16> to vector<16x256xbf16>
    %c3_98 = arith.constant 3 : index
    %c0_99 = arith.constant 0 : index
    %c0_100 = arith.constant 0 : index
    %174 = vector.load %arg10[%c3_98, %c0_99, %c0_100] : memref<9x16x16xbf16, #tpu.memory_space<vmem>>, vector<1x16x16xbf16>
    %175 = vector.shape_cast %174 : vector<1x16x16xbf16> to vector<16x16xbf16>
    %cst_101 = arith.constant dense<0.000000e+00> : vector<16x256xf32>
    %176 = tpu.matmul %175, %173, %cst_101 {dimension_numbers = #tpu.dot_dimension_numbers<[1], [0], [0], [1], [0, 0, 1, 1], [], []>} : vector<16x16xbf16>, vector<16x256xbf16>, vector<16x256xf32> -> vector<16x256xf32>
    %177 = arith.addf %172, %176 : vector<16x256xf32>
    %178 = vector.extract_strided_slice %150 {offsets = [0, 17], sizes = [16, 256], strides = [1, 1]} : vector<16x290xbf16> to vector<16x256xbf16>
    %c4_102 = arith.constant 4 : index
    %c0_103 = arith.constant 0 : index
    %c0_104 = arith.constant 0 : index
    %179 = vector.load %arg10[%c4_102, %c0_103, %c0_104] : memref<9x16x16xbf16, #tpu.memory_space<vmem>>, vector<1x16x16xbf16>
    %180 = vector.shape_cast %179 : vector<1x16x16xbf16> to vector<16x16xbf16>
    %cst_105 = arith.constant dense<0.000000e+00> : vector<16x256xf32>
    %181 = tpu.matmul %180, %178, %cst_105 {dimension_numbers = #tpu.dot_dimension_numbers<[1], [0], [0], [1], [0, 0, 1, 1], [], []>} : vector<16x16xbf16>, vector<16x256xbf16>, vector<16x256xf32> -> vector<16x256xf32>
    %182 = arith.addf %177, %181 : vector<16x256xf32>
    %183 = vector.extract_strided_slice %156 {offsets = [0, 18], sizes = [16, 256], strides = [1, 1]} : vector<16x290xbf16> to vector<16x256xbf16>
    %c5_106 = arith.constant 5 : index
    %c0_107 = arith.constant 0 : index
    %c0_108 = arith.constant 0 : index
    %184 = vector.load %arg10[%c5_106, %c0_107, %c0_108] : memref<9x16x16xbf16, #tpu.memory_space<vmem>>, vector<1x16x16xbf16>
    %185 = vector.shape_cast %184 : vector<1x16x16xbf16> to vector<16x16xbf16>
    %cst_109 = arith.constant dense<0.000000e+00> : vector<16x256xf32>
    %186 = tpu.matmul %185, %183, %cst_109 {dimension_numbers = #tpu.dot_dimension_numbers<[1], [0], [0], [1], [0, 0, 1, 1], [], []>} : vector<16x16xbf16>, vector<16x256xbf16>, vector<16x256xf32> -> vector<16x256xf32>
    %187 = arith.addf %182, %186 : vector<16x256xf32>
    %188 = vector.extract_strided_slice %153 {offsets = [0, 32], sizes = [16, 256], strides = [1, 1]} : vector<16x290xbf16> to vector<16x256xbf16>
    %c6_110 = arith.constant 6 : index
    %c0_111 = arith.constant 0 : index
    %c0_112 = arith.constant 0 : index
    %189 = vector.load %arg10[%c6_110, %c0_111, %c0_112] : memref<9x16x16xbf16, #tpu.memory_space<vmem>>, vector<1x16x16xbf16>
    %190 = vector.shape_cast %189 : vector<1x16x16xbf16> to vector<16x16xbf16>
    %cst_113 = arith.constant dense<0.000000e+00> : vector<16x256xf32>
    %191 = tpu.matmul %190, %188, %cst_113 {dimension_numbers = #tpu.dot_dimension_numbers<[1], [0], [0], [1], [0, 0, 1, 1], [], []>} : vector<16x16xbf16>, vector<16x256xbf16>, vector<16x256xf32> -> vector<16x256xf32>
    %192 = arith.addf %187, %191 : vector<16x256xf32>
    %193 = vector.extract_strided_slice %150 {offsets = [0, 33], sizes = [16, 256], strides = [1, 1]} : vector<16x290xbf16> to vector<16x256xbf16>
    %c7_114 = arith.constant 7 : index
    %c0_115 = arith.constant 0 : index
    %c0_116 = arith.constant 0 : index
    %194 = vector.load %arg10[%c7_114, %c0_115, %c0_116] : memref<9x16x16xbf16, #tpu.memory_space<vmem>>, vector<1x16x16xbf16>
    %195 = vector.shape_cast %194 : vector<1x16x16xbf16> to vector<16x16xbf16>
    %cst_117 = arith.constant dense<0.000000e+00> : vector<16x256xf32>
    %196 = tpu.matmul %195, %193, %cst_117 {dimension_numbers = #tpu.dot_dimension_numbers<[1], [0], [0], [1], [0, 0, 1, 1], [], []>} : vector<16x16xbf16>, vector<16x256xbf16>, vector<16x256xf32> -> vector<16x256xf32>
    %197 = arith.addf %192, %196 : vector<16x256xf32>
    %198 = vector.extract_strided_slice %156 {offsets = [0, 34], sizes = [16, 256], strides = [1, 1]} : vector<16x290xbf16> to vector<16x256xbf16>
    %c8_118 = arith.constant 8 : index
    %c0_119 = arith.constant 0 : index
    %c0_120 = arith.constant 0 : index
    %199 = vector.load %arg10[%c8_118, %c0_119, %c0_120] : memref<9x16x16xbf16, #tpu.memory_space<vmem>>, vector<1x16x16xbf16>
    %200 = vector.shape_cast %199 : vector<1x16x16xbf16> to vector<16x16xbf16>
    %cst_121 = arith.constant dense<0.000000e+00> : vector<16x256xf32>
    %201 = tpu.matmul %200, %198, %cst_121 {dimension_numbers = #tpu.dot_dimension_numbers<[1], [0], [0], [1], [0, 0, 1, 1], [], []>} : vector<16x16xbf16>, vector<16x256xbf16>, vector<16x256xf32> -> vector<16x256xf32>
    %202 = arith.addf %197, %201 : vector<16x256xf32>
    %203 = vector.broadcast %8 : vector<16x1xf32> to vector<16x256xf32>
    %204 = arith.addf %202, %203 : vector<16x256xf32>
    %c0_122 = arith.constant 0 : index
    %c0_123 = arith.constant 0 : index
    %205 = vector.load %arg11[%c0_122, %c0_123] : memref<16x8xbf16, #tpu.memory_space<vmem>>, vector<16x8xbf16>
    %206 = arith.truncf %1 : vector<8x256xf32> to vector<8x256xbf16>
    %cst_124 = arith.constant dense<0.000000e+00> : vector<16x256xf32>
    %207 = tpu.matmul %205, %206, %cst_124 {dimension_numbers = #tpu.dot_dimension_numbers<[1], [0], [0], [1], [0, 0, 1, 1], [], []>} : vector<16x8xbf16>, vector<8x256xbf16>, vector<16x256xf32> -> vector<16x256xf32>
    %208 = vector.broadcast %9 : vector<16x1xf32> to vector<16x256xf32>
    %209 = arith.addf %207, %208 : vector<16x256xf32>
    %210 = arith.addf %204, %209 : vector<16x256xf32>
    %c0_125 = arith.constant 0 : index
    %c0_126 = arith.constant 0 : index
    %c0_127 = arith.constant 0 : index
    %211 = vector.load %arg12[%c0_125, %c0_126, %c0_127] : memref<1x16x256xf32, #tpu.memory_space<vmem>>, vector<1x16x256xf32>
    %212 = vector.shape_cast %211 : vector<1x16x256xf32> to vector<16x256xf32>
    %213 = vector.shape_cast %210 : vector<16x256xf32> to vector<1x16x256xf32>
    tpu.vector_store %arg12[%c0_125, %c0_126, %c0_127], %213 {strides = array<i32>} : memref<1x16x256xf32, #tpu.memory_space<vmem>>, vector<1x16x256xf32>,
    return
  }
  func.func @transform_0(%arg0: i32) -> (i32, i32, i32) {
    %c0_i32 = arith.constant 0 : i32
    %c0_i32_0 = arith.constant 0 : i32
    %c0_i32_1 = arith.constant 0 : i32
    return %arg0, %c0_i32, %c0_i32_0 : i32, i32, i32
  }
  func.func @transform_1(%arg0: i32) -> (i32, i32, i32) {
    %c0_i32 = arith.constant 0 : i32
    %c0_i32_0 = arith.constant 0 : i32
    %c0_i32_1 = arith.constant 0 : i32
    return %arg0, %c0_i32, %c0_i32_0 : i32, i32, i32
  }
  func.func @transform_2(%arg0: i32) -> (i32, i32) {
    %c0_i32 = arith.constant 0 : i32
    %c0_i32_0 = arith.constant 0 : i32
    %c0_i32_1 = arith.constant 0 : i32
    return %c0_i32, %c0_i32_0 : i32, i32
  }
  func.func @transform_3(%arg0: i32) -> (i32, i32) {
    %c0_i32 = arith.constant 0 : i32
    %c0_i32_0 = arith.constant 0 : i32
    %c0_i32_1 = arith.constant 0 : i32
    return %c0_i32, %c0_i32_0 : i32, i32
  }
  func.func @transform_4(%arg0: i32) -> (i32, i32) {
    %c0_i32 = arith.constant 0 : i32
    %c0_i32_0 = arith.constant 0 : i32
    %c0_i32_1 = arith.constant 0 : i32
    return %c0_i32, %c0_i32_0 : i32, i32
  }
  func.func @transform_5(%arg0: i32) -> (i32, i32) {
    %c0_i32 = arith.constant 0 : i32
    %c0_i32_0 = arith.constant 0 : i32
    %c0_i32_1 = arith.constant 0 : i32
    return %c0_i32, %c0_i32_0 : i32, i32
  }
  func.func @transform_6(%arg0: i32) -> (i32, i32) {
    %c0_i32 = arith.constant 0 : i32
    %c0_i32_0 = arith.constant 0 : i32
    %c0_i32_1 = arith.constant 0 : i32
    return %c0_i32, %c0_i32_0 : i32, i32
  }
  func.func @transform_7(%arg0: i32) -> (i32, i32, i32) {
    %c0_i32 = arith.constant 0 : i32
    %c0_i32_0 = arith.constant 0 : i32
    %c0_i32_1 = arith.constant 0 : i32
    %c0_i32_2 = arith.constant 0 : i32
    return %c0_i32, %c0_i32_0, %c0_i32_1 : i32, i32, i32
  }
  func.func @transform_8(%arg0: i32) -> (i32, i32) {
    %c0_i32 = arith.constant 0 : i32
    %c0_i32_0 = arith.constant 0 : i32
    %c0_i32_1 = arith.constant 0 : i32
    return %c0_i32, %c0_i32_0 : i32, i32
  }
  func.func @transform_9(%arg0: i32) -> (i32, i32, i32) {
    %c0_i32 = arith.constant 0 : i32
    %c0_i32_0 = arith.constant 0 : i32
    %c0_i32_1 = arith.constant 0 : i32
    %c0_i32_2 = arith.constant 0 : i32
    return %c0_i32, %c0_i32_0, %c0_i32_1 : i32, i32, i32
  }
  func.func @transform_10(%arg0: i32) -> (i32, i32) {
    %c0_i32 = arith.constant 0 : i32
    %c0_i32_0 = arith.constant 0 : i32
    %c0_i32_1 = arith.constant 0 : i32
    return %c0_i32, %c0_i32_0 : i32, i32
  }
  func.func @transform_11(%arg0: i32) -> (i32, i32, i32) {
    %c0_i32 = arith.constant 0 : i32
    %c0_i32_0 = arith.constant 0 : i32
    %c0_i32_1 = arith.constant 0 : i32
    return %arg0, %c0_i32, %c0_i32_0 : i32, i32, i32
  }
}

</mosaic_0001>

<llo_original>
// kernel: tpu_custom_call.1
$region0: #{tpu_custom_call.1}
  #allocation0 [shape = 'u32[]', space=smem, size = 0x4, offset = 0x4, fixed_abs, tag = 'smem constant byte address 0x4 - core index']
  #allocation1 [shape = 'u32[144,128]{1,0:T(1,128)}', space=vmem, size = 0x12000, scoped, tag = 'internal scratch']
  %s0 = inlined_call_operand.vmem [shape: f32[2,8,256], index: 0, kind: input, shape index: {}]
  %s1 = inlined_call_operand.vmem [shape: f32[2,32,1], index: 1, kind: input, shape index: {}]
  %s2 = inlined_call_operand.vmem [shape: bf16[2,290], index: 2, kind: input, shape index: {}]
  %s3 = inlined_call_operand.vmem [shape: f32[8,8], index: 3, kind: input, shape index: {}]
  %s4 = inlined_call_operand.vmem [shape: f32[16,16], index: 4, kind: input, shape index: {}]
  %s5 = inlined_call_operand.vmem [shape: f32[8,2], index: 5, kind: input, shape index: {}]
  %s6 = inlined_call_operand.vmem [shape: f32[16,6], index: 6, kind: input, shape index: {}]
  %s7 = inlined_call_operand.vmem [shape: bf16[9,16,8], index: 7, kind: input, shape index: {}]
  %s8 = inlined_call_operand.vmem [shape: f32[16,32], index: 8, kind: input, shape index: {}]
  %s9 = inlined_call_operand.vmem [shape: bf16[9,16,16], index: 9, kind: input, shape index: {}]
  %s10 = inlined_call_operand.vmem [shape: bf16[16,8], index: 10, kind: input, shape index: {}]
  %s11 = inlined_call_operand.hbm [shape: f32[2,16,256], index: 11, kind: output, shape index: {}]
  %s12 = sld [smem:[#allocation0]]
  $region77: #{tpu_custom_call.1} parent=0
    _
  %s14 = ssub.s32 1, %s12
  %s15 = scalar_select 0, %s14, %s12
  $region1: #{tpu_custom_call.1} parent=0
    #allocation2 [shape = 'u8[32768]{0}', space=vmem, size = 0x8000, scoped, tag = 'output window, operand 0']
    #allocation3 [shape = 's32[2]{0}', space=sflag, size = 0x8, scoped, tag = 'scoped memory for tpu_custom_call.1']
    %16 = vsyncpa [#allocation3], 0
    %s17 = scalar_lea.sflag [#allocation3], 1
    %18 = vsyncpa %s17, 0
    loop: start=0, step=1, limit=4
    $region2: #{tpu_custom_call.1} parent=1 // loop_pre_header
      _
    $region3: #{tpu_custom_call.1} parent=1 // loop_header
      %s20 = sphi 0, %s24
      %p21 = scmp.ge.s32.totalorder %s20, 4
      %s30 = sphi 0, %s32
      %s33 = sphi 0, %s30
      %s34 = sphi 0, %s33
      %s50 = sphi 0, %s34
      %s56 = sphi 0, %s58
      %s59 = sphi 0, %s56
      %s60 = sphi 0, %s59
      %s76 = sphi 0, %s60
      %s80 = sphi 0, %s80
      %s82 = sphi 0, %s80
      %s83 = sphi 0, %s82
      %s97 = sphi 0, %s83
      %s101 = sphi 0, %s101
      %s103 = sphi 0, %s101
      %s104 = sphi 0, %s103
      %s118 = sphi 0, %s104
      %s122 = sphi 0, %s122
      %s124 = sphi 0, %s122
      %s125 = sphi 0, %s124
      %s139 = sphi 0, %s125
      %s143 = sphi 0, %s143
      %s145 = sphi 0, %s143
      %s146 = sphi 0, %s145
      %s160 = sphi 0, %s146
      %s164 = sphi 0, %s164
      %s166 = sphi 0, %s164
      %s167 = sphi 0, %s166
      %s181 = sphi 0, %s167
      %s185 = sphi 0, %s185
      %s187 = sphi 0, %s185
      %s188 = sphi 0, %s187
      %s202 = sphi 0, %s188
      %s206 = sphi 0, %s206
      %s208 = sphi 0, %s206
      %s209 = sphi 0, %s208
      %s223 = sphi 0, %s209
      %s227 = sphi 0, %s227
      %s229 = sphi 0, %s227
      %s230 = sphi 0, %s229
      %s244 = sphi 0, %s230
      %s248 = sphi 0, %s248
      %s250 = sphi 0, %s248
      %s251 = sphi 0, %s250
      %s265 = sphi 0, %s251
      %s271 = sphi 0, %s273
      %s274 = sphi 0, %s271
      %s275 = sphi 0, %s274
      %s291 = sphi 0, %s275
    $region4: #{tpu_custom_call.1} parent=1 // loop_header_branch
      %23 = sbr.rel (%p21) target = $region8
    $region5: #{tpu_custom_call.1} parent=1 // loop_body
      %s25 = ssub.s32 %s20, 1
      %s26 = ssub.s32 %s20, 2
      %s27 = sadd.s32 %s20, 1
      %s28 = ssub.s32 %s20, %s27
      %p29 = scmp.eq.s32.totalorder %s28, 0
      %s31 = sadd.s32 %s30, 1
      %s32 = scalar_select %p29, %s30, %s31
      %p35 = pneg %p29
      %p36 = scmp.eq.s32.totalorder %s20, 1
      %p37 = por %p35, %p36
      %p38 = scmp.ne.s32.totalorder %s30, %s33
      %p39 = scmp.eq.s32.totalorder %s20, 0
      %p40 = por %p38, %p39
      %p41 = scmp.ne.s32.totalorder %s30, %s33
      %p42 = scmp.eq.s32.totalorder %s25, 1
      %p43 = por %p41, %p42
      %p44 = scmp.ne.s32.totalorder %s33, %s34
      %p45 = scmp.eq.s32.totalorder %s25, 0
      %p46 = por %p44, %p45
      %p47 = scmp.ne.s32.totalorder %s33, %s34
      %p48 = scmp.eq.s32.totalorder %s26, 1
      %p49 = por %p47, %p48
      %p51 = scmp.ne.s32.totalorder %s34, %s50
      %p52 = scmp.eq.s32.totalorder %s26, 0
      %p53 = por %p51, %p52
      %s54 = ssub.s32 %s20, %s27
      %p55 = scmp.eq.s32.totalorder %s54, 0
      %s57 = sadd.s32 %s56, 1
      %s58 = scalar_select %p55, %s56, %s57
      %p61 = pneg %p55
      %p62 = scmp.eq.s32.totalorder %s20, 1
      %p63 = por %p61, %p62
      %p64 = scmp.ne.s32.totalorder %s56, %s59
      %p65 = scmp.eq.s32.totalorder %s20, 0
      %p66 = por %p64, %p65
      %p67 = scmp.ne.s32.totalorder %s56, %s59
      %p68 = scmp.eq.s32.totalorder %s25, 1
      %p69 = por %p67, %p68
      %p70 = scmp.ne.s32.totalorder %s59, %s60
      %p71 = scmp.eq.s32.totalorder %s25, 0
      %p72 = por %p70, %p71
      %p73 = scmp.ne.s32.totalorder %s59, %s60
      %p74 = scmp.eq.s32.totalorder %s26, 1
      %p75 = por %p73, %p74
      %p77 = scmp.ne.s32.totalorder %s60, %s76
      %p78 = scmp.eq.s32.totalorder %s26, 0
      %p79 = por %p77, %p78
      %s81 = sadd.s32 %s80, 1
      %p84 = scmp.eq.s32.totalorder %s20, 1
      %p85 = scmp.ne.s32.totalorder %s80, %s82
      %p86 = scmp.eq.s32.totalorder %s20, 0
      %p87 = por %p85, %p86
      %p88 = scmp.ne.s32.totalorder %s80, %s82
      %p89 = scmp.eq.s32.totalorder %s25, 1
      %p90 = por %p88, %p89
      %p91 = scmp.ne.s32.totalorder %s82, %s83
      %p92 = scmp.eq.s32.totalorder %s25, 0
      %p93 = por %p91, %p92
      %p94 = scmp.ne.s32.totalorder %s82, %s83
      %p95 = scmp.eq.s32.totalorder %s26, 1
      %p96 = por %p94, %p95
      %p98 = scmp.ne.s32.totalorder %s83, %s97
      %p99 = scmp.eq.s32.totalorder %s26, 0
      %p100 = por %p98, %p99
      %s102 = sadd.s32 %s101, 1
      %p105 = scmp.eq.s32.totalorder %s20, 1
      %p106 = scmp.ne.s32.totalorder %s101, %s103
      %p107 = scmp.eq.s32.totalorder %s20, 0
      %p108 = por %p106, %p107
      %p109 = scmp.ne.s32.totalorder %s101, %s103
      %p110 = scmp.eq.s32.totalorder %s25, 1
      %p111 = por %p109, %p110
      %p112 = scmp.ne.s32.totalorder %s103, %s104
      %p113 = scmp.eq.s32.totalorder %s25, 0
      %p114 = por %p112, %p113
      %p115 = scmp.ne.s32.totalorder %s103, %s104
      %p116 = scmp.eq.s32.totalorder %s26, 1
      %p117 = por %p115, %p116
      %p119 = scmp.ne.s32.totalorder %s104, %s118
      %p120 = scmp.eq.s32.totalorder %s26, 0
      %p121 = por %p119, %p120
      %s123 = sadd.s32 %s122, 1
      %p126 = scmp.eq.s32.totalorder %s20, 1
      %p127 = scmp.ne.s32.totalorder %s122, %s124
      %p128 = scmp.eq.s32.totalorder %s20, 0
      %p129 = por %p127, %p128
      %p130 = scmp.ne.s32.totalorder %s122, %s124
      %p131 = scmp.eq.s32.totalorder %s25, 1
      %p132 = por %p130, %p131
      %p133 = scmp.ne.s32.totalorder %s124, %s125
      %p134 = scmp.eq.s32.totalorder %s25, 0
      %p135 = por %p133, %p134
      %p136 = scmp.ne.s32.totalorder %s124, %s125
      %p137 = scmp.eq.s32.totalorder %s26, 1
      %p138 = por %p136, %p137
      %p140 = scmp.ne.s32.totalorder %s125, %s139
      %p141 = scmp.eq.s32.totalorder %s26, 0
      %p142 = por %p140, %p141
      %s144 = sadd.s32 %s143, 1
      %p147 = scmp.eq.s32.totalorder %s20, 1
      %p148 = scmp.ne.s32.totalorder %s143, %s145
      %p149 = scmp.eq.s32.totalorder %s20, 0
      %p150 = por %p148, %p149
      %p151 = scmp.ne.s32.totalorder %s143, %s145
      %p152 = scmp.eq.s32.totalorder %s25, 1
      %p153 = por %p151, %p152
      %p154 = scmp.ne.s32.totalorder %s145, %s146
      %p155 = scmp.eq.s32.totalorder %s25, 0
      %p156 = por %p154, %p155
      %p157 = scmp.ne.s32.totalorder %s145, %s146
      %p158 = scmp.eq.s32.totalorder %s26, 1
      %p159 = por %p157, %p158
      %p161 = scmp.ne.s32.totalorder %s146, %s160
      %p162 = scmp.eq.s32.totalorder %s26, 0
      %p163 = por %p161, %p162
      %s165 = sadd.s32 %s164, 1
      %p168 = scmp.eq.s32.totalorder %s20, 1
      %p169 = scmp.ne.s32.totalorder %s164, %s166
      %p170 = scmp.eq.s32.totalorder %s20, 0
      %p171 = por %p169, %p170
      %p172 = scmp.ne.s32.totalorder %s164, %s166
      %p173 = scmp.eq.s32.totalorder %s25, 1
      %p174 = por %p172, %p173
      %p175 = scmp.ne.s32.totalorder %s166, %s167
      %p176 = scmp.eq.s32.totalorder %s25, 0
      %p177 = por %p175, %p176
      %p178 = scmp.ne.s32.totalorder %s166, %s167
      %p179 = scmp.eq.s32.totalorder %s26, 1
      %p180 = por %p178, %p179
      %p182 = scmp.ne.s32.totalorder %s167, %s181
      %p183 = scmp.eq.s32.totalorder %s26, 0
      %p184 = por %p182, %p183
      %s186 = sadd.s32 %s185, 1
      %p189 = scmp.eq.s32.totalorder %s20, 1
      %p190 = scmp.ne.s32.totalorder %s185, %s187
      %p191 = scmp.eq.s32.totalorder %s20, 0
      %p192 = por %p190, %p191
      %p193 = scmp.ne.s32.totalorder %s185, %s187
      %p194 = scmp.eq.s32.totalorder %s25, 1
      %p195 = por %p193, %p194
      %p196 = scmp.ne.s32.totalorder %s187, %s188
      %p197 = scmp.eq.s32.totalorder %s25, 0
      %p198 = por %p196, %p197
      %p199 = scmp.ne.s32.totalorder %s187, %s188
      %p200 = scmp.eq.s32.totalorder %s26, 1
      %p201 = por %p199, %p200
      %p203 = scmp.ne.s32.totalorder %s188, %s202
      %p204 = scmp.eq.s32.totalorder %s26, 0
      %p205 = por %p203, %p204
      %s207 = sadd.s32 %s206, 1
      %p210 = scmp.eq.s32.totalorder %s20, 1
      %p211 = scmp.ne.s32.totalorder %s206, %s208
      %p212 = scmp.eq.s32.totalorder %s20, 0
      %p213 = por %p211, %p212
      %p214 = scmp.ne.s32.totalorder %s206, %s208
      %p215 = scmp.eq.s32.totalorder %s25, 1
      %p216 = por %p214, %p215
      %p217 = scmp.ne.s32.totalorder %s208, %s209
      %p218 = scmp.eq.s32.totalorder %s25, 0
      %p219 = por %p217, %p218
      %p220 = scmp.ne.s32.totalorder %s208, %s209
      %p221 = scmp.eq.s32.totalorder %s26, 1
      %p222 = por %p220, %p221
      %p224 = scmp.ne.s32.totalorder %s209, %s223
      %p225 = scmp.eq.s32.totalorder %s26, 0
      %p226 = por %p224, %p225
      %s228 = sadd.s32 %s227, 1
      %p231 = scmp.eq.s32.totalorder %s20, 1
      %p232 = scmp.ne.s32.totalorder %s227, %s229
      %p233 = scmp.eq.s32.totalorder %s20, 0
      %p234 = por %p232, %p233
      %p235 = scmp.ne.s32.totalorder %s227, %s229
      %p236 = scmp.eq.s32.totalorder %s25, 1
      %p237 = por %p235, %p236
      %p238 = scmp.ne.s32.totalorder %s229, %s230
      %p239 = scmp.eq.s32.totalorder %s25, 0
      %p240 = por %p238, %p239
      %p241 = scmp.ne.s32.totalorder %s229, %s230
      %p242 = scmp.eq.s32.totalorder %s26, 1
      %p243 = por %p241, %p242
      %p245 = scmp.ne.s32.totalorder %s230, %s244
      %p246 = scmp.eq.s32.totalorder %s26, 0
      %p247 = por %p245, %p246
      %s249 = sadd.s32 %s248, 1
      %p252 = scmp.eq.s32.totalorder %s20, 1
      %p253 = scmp.ne.s32.totalorder %s248, %s250
      %p254 = scmp.eq.s32.totalorder %s20, 0
      %p255 = por %p253, %p254
      %p256 = scmp.ne.s32.totalorder %s248, %s250
      %p257 = scmp.eq.s32.totalorder %s25, 1
      %p258 = por %p256, %p257
      %p259 = scmp.ne.s32.totalorder %s250, %s251
      %p260 = scmp.eq.s32.totalorder %s25, 0
      %p261 = por %p259, %p260
      %p262 = scmp.ne.s32.totalorder %s250, %s251
      %p263 = scmp.eq.s32.totalorder %s26, 1
      %p264 = por %p262, %p263
      %p266 = scmp.ne.s32.totalorder %s251, %s265
      %p267 = scmp.eq.s32.totalorder %s26, 0
      %p268 = por %p266, %p267
      %s269 = ssub.s32 %s20, %s27
      %p270 = scmp.eq.s32.totalorder %s269, 0
      %s272 = sadd.s32 %s271, 1
      %s273 = scalar_select %p270, %s271, %s272
      %p276 = pneg %p270
      %p277 = scmp.eq.s32.totalorder %s20, 1
      %p278 = por %p276, %p277
      %p279 = scmp.ne.s32.totalorder %s271, %s274
      %p280 = scmp.eq.s32.totalorder %s20, 0
      %p281 = por %p279, %p280
      %p282 = scmp.ne.s32.totalorder %s271, %s274
      %p283 = scmp.eq.s32.totalorder %s25, 1
      %p284 = por %p282, %p283
      %p285 = scmp.ne.s32.totalorder %s274, %s275
      %p286 = scmp.eq.s32.totalorder %s25, 0
      %p287 = por %p285, %p286
      %p288 = scmp.ne.s32.totalorder %s274, %s275
      %p289 = scmp.eq.s32.totalorder %s26, 1
      %p290 = por %p288, %p289
      %p292 = scmp.ne.s32.totalorder %s275, %s291
      %p293 = scmp.eq.s32.totalorder %s26, 0
      %p294 = por %p292, %p293
      %p295 = scmp.le.s32.totalorder 1, %s20
      %p296 = scmp.lt.s32.totalorder %s20, 3
      %p297 = pnand %p295, %p296
      %p298 = pneg %p297
      // Predicated region
      $region9: #{tpu_custom_call.1} parent=5 // pred_check
        _
      $region10: #{tpu_custom_call.1} parent=5 // pred_check_branch
        %300 = sbr.rel (%p297) target = $region12
      $region11: #{tpu_custom_call.1} parent=5 // pred_region
        %s301 = ssub.s32 %s20, 1
        // Predicated region
        $region13: #{tpu_custom_call.1} parent=11 // pred_check
          %p302 = pneg %p93
        $region14: #{tpu_custom_call.1} parent=11 // pred_check_branch
          %304 = sbr.rel (%p302) target = $region16
        $region15: #{tpu_custom_call.1} parent=11 // pred_region
          _
        $region16: #{tpu_custom_call.1} parent=11 // pred_fallthru
          _
        // Predicated region
        $region17: #{tpu_custom_call.1} parent=11 // pred_check
          %p305 = pneg %p114
        $region18: #{tpu_custom_call.1} parent=11 // pred_check_branch
          %307 = sbr.rel (%p305) target = $region20
        $region19: #{tpu_custom_call.1} parent=11 // pred_region
          _
        $region20: #{tpu_custom_call.1} parent=11 // pred_fallthru
          _
        // Predicated region
        $region21: #{tpu_custom_call.1} parent=11 // pred_check
          %p308 = pneg %p135
        $region22: #{tpu_custom_call.1} parent=11 // pred_check_branch
          %310 = sbr.rel (%p308) target = $region24
        $region23: #{tpu_custom_call.1} parent=11 // pred_region
          _
        $region24: #{tpu_custom_call.1} parent=11 // pred_fallthru
          _
        // Predicated region
        $region25: #{tpu_custom_call.1} parent=11 // pred_check
          %p311 = pneg %p156
        $region26: #{tpu_custom_call.1} parent=11 // pred_check_branch
          %313 = sbr.rel (%p311) target = $region28
        $region27: #{tpu_custom_call.1} parent=11 // pred_region
          _
        $region28: #{tpu_custom_call.1} parent=11 // pred_fallthru
          _
        // Predicated region
        $region29: #{tpu_custom_call.1} parent=11 // pred_check
          %p314 = pneg %p177
        $region30: #{tpu_custom_call.1} parent=11 // pred_check_branch
          %316 = sbr.rel (%p314) target = $region32
        $region31: #{tpu_custom_call.1} parent=11 // pred_region
          _
        $region32: #{tpu_custom_call.1} parent=11 // pred_fallthru
          _
        // Predicated region
        $region33: #{tpu_custom_call.1} parent=11 // pred_check
          %p317 = pneg %p198
        $region34: #{tpu_custom_call.1} parent=11 // pred_check_branch
          %319 = sbr.rel (%p317) target = $region36
        $region35: #{tpu_custom_call.1} parent=11 // pred_region
          _
        $region36: #{tpu_custom_call.1} parent=11 // pred_fallthru
          _
        // Predicated region
        $region37: #{tpu_custom_call.1} parent=11 // pred_check
          %p320 = pneg %p219
        $region38: #{tpu_custom_call.1} parent=11 // pred_check_branch
          %322 = sbr.rel (%p320) target = $region40
        $region39: #{tpu_custom_call.1} parent=11 // pred_region
          _
        $region40: #{tpu_custom_call.1} parent=11 // pred_fallthru
          _
        // Predicated region
        $region41: #{tpu_custom_call.1} parent=11 // pred_check
          %p323 = pneg %p240
        $region42: #{tpu_custom_call.1} parent=11 // pred_check_branch
          %325 = sbr.rel (%p323) target = $region44
        $region43: #{tpu_custom_call.1} parent=11 // pred_region
          _
        $region44: #{tpu_custom_call.1} parent=11 // pred_fallthru
          _
        // Predicated region
        $region45: #{tpu_custom_call.1} parent=11 // pred_check
          %p326 = pneg %p261
        $region46: #{tpu_custom_call.1} parent=11 // pred_check_branch
          %328 = sbr.rel (%p326) target = $region48
        $region47: #{tpu_custom_call.1} parent=11 // pred_region
          _
        $region48: #{tpu_custom_call.1} parent=11 // pred_fallthru
          _
      $region12: #{tpu_custom_call.1} parent=5 // pred_fallthru
        _
      %p329 = scmp.lt.s32.totalorder %s20, 2
      // Predicated region
      $region49: #{tpu_custom_call.1} parent=5 // pred_check
        %p330 = pneg %p329
      $region50: #{tpu_custom_call.1} parent=5 // pred_check_branch
        %332 = sbr.rel (%p330) target = $region52
      $region51: #{tpu_custom_call.1} parent=5 // pred_region
        // Predicated region
        $region53: #{tpu_custom_call.1} parent=51 // pred_check
          %p333 = pneg %p40
        $region54: #{tpu_custom_call.1} parent=51 // pred_check_branch
          %335 = sbr.rel (%p333) target = $region56
        $region55: #{tpu_custom_call.1} parent=51 // pred_region
          %p336 = scmp.lt.s32.totalorder %s20, 1
          %s337 = scalar_select %p336, %s20, 1
          %s338 = smul.addr %s337, 2
          %s339 = smul.addr %s338, 8
          %s340 = scalar_lea.vmem %s0, %s339
        $region56: #{tpu_custom_call.1} parent=51 // pred_fallthru
          _
        // Predicated region
        $region57: #{tpu_custom_call.1} parent=51 // pred_check
          %p341 = pneg %p66
        $region58: #{tpu_custom_call.1} parent=51 // pred_check_branch
          %343 = sbr.rel (%p341) target = $region60
        $region59: #{tpu_custom_call.1} parent=51 // pred_region
          %p344 = scmp.lt.s32.totalorder %s20, 1
          %s345 = scalar_select %p344, %s20, 1
          %s346 = smul.addr %s345, 4
          %s347 = smul.addr %s346, 8
          %s348 = scalar_lea.vmem %s1, %s347
        $region60: #{tpu_custom_call.1} parent=51 // pred_fallthru
          _
      $region52: #{tpu_custom_call.1} parent=5 // pred_fallthru
        _
      %p349 = scmp.le.s32.totalorder 1, %s20
      %p350 = scmp.lt.s32.totalorder %s20, 3
      %p351 = pnand %p349, %p350
      %p352 = pneg %p351
      // Predicated region
      $region61: #{tpu_custom_call.1} parent=5 // pred_check
        _
      $region62: #{tpu_custom_call.1} parent=5 // pred_check_branch
        %354 = sbr.rel (%p351) target = $region64
      $region63: #{tpu_custom_call.1} parent=5 // pred_region
        %s355 = ssub.s32 %s20, 1
        %p356 = scmp.lt.s32.totalorder %s25, 1
        %s357 = scalar_select %p356, %s25, 1
        %s358 = smul.addr %s357, 2
        %s359 = smul.addr %s358, 8
        %s360 = scalar_lea.vmem %s0, %s359
        %p361 = pneg %p46
        %p362 = pneg %p43
        %p363 = scmp.lt.s32.totalorder %s25, 1
        %s364 = scalar_select %p363, %s25, 1
        %s365 = smul.addr %s364, 4
        %s366 = smul.addr %s365, 8
        %s367 = scalar_lea.vmem %s1, %s366
        %p368 = pneg %p72
        %p369 = pneg %p69
        %p370 = pneg %p93
        %p371 = pneg %p90
        %p372 = pneg %p114
        %p373 = pneg %p111
        %p374 = pneg %p135
        %p375 = pneg %p132
        %p376 = pneg %p156
        %p377 = pneg %p153
        %p378 = pneg %p177
        %p379 = pneg %p174
        %p380 = pneg %p198
        %p381 = pneg %p195
        %p382 = pneg %p219
        %p383 = pneg %p216
        %p384 = pneg %p240
        %p385 = pneg %p237
        %p386 = pneg %p261
        %p387 = pneg %p258
        %p388 = pneg %p287
        %p389 = pneg %p284
        %s390 = sand.u32 %s274, 1
        %s391 = scalar_lea.sflag [#allocation3], %s390
        %s392 = sand.u32 %s274, 1
        %s393 = smul.addr %s392, 32
        %s394 = scalar_lea.vmem [#allocation2], %s393
        %p395 = scmp.lt.s32.totalorder %s25, 1
        %s396 = scalar_select %p395, %s25, 1
        %s397 = smul.addr %s396, 2
        %s398 = smul.addr %s397, 8
        %s399 = scalar_lea.vmem %s0, %s398
        %p400 = scmp.lt.s32.totalorder %s25, 1
        %s401 = scalar_select %p400, %s25, 1
        %s402 = smul.addr %s401, 4
        %s403 = smul.addr %s402, 8
        %s404 = scalar_lea.vmem %s1, %s403
        %v406 = vld [vmem:[%s399] sm:$0xff]
        %v407 = vld [vmem:[%s399 + $0x8] sm:$0xff]
        %v408 = vld [vmem:[%s5] sm:$0xff]
        %v409 = vld [vmem:[%s6] sm:$0xff]
        %v410 = vld [vmem:[%s6 + $0x8] sm:$0xff]
        %v411 = vadd.f32 %v406, %v407
        %412 = vadd.xlane.f32.xlu0 %v411
        %v413 = vpop.xlane.xlu0 %412
        %v414 = vmul.f32 %v406, %v406
        %v415 = vmul.f32 %v407, %v407
        %v416 = vadd.f32 %v414, %v415
        %417 = vadd.xlane.f32.xlu0 %v416
        %v418 = vpop.xlane.xlu0 %417
        %vm419 = vcmask 7168
        %v420 = vsel %vm419, %v413, %v418
        %v421 = vld [vmem:[%s3] sm:$0xff]
        %vm422 = vcmask 64512
        %v424 = vsel %vm422, %v421, 0
        %426 = vmatprep.subr.mxu0 0.0
        %427 = vmatpush1.msra.mxu0 0.0
        %428 = vmatprep.subr.mxu0 0.0
        %429 = vmatpush1.msra.mxu0 0.0
        %430 = vmatprep.subr.mxu0 0.0
        %431 = vmatpush1.msra.mxu0 0.0
        %432 = vmatprep.subr.mxu0 0.0
        %433 = vmatpush1.msra.mxu0 0.0
        %434 = vmatprep.subr.mxu0 0.0
        %435 = vmatpush1.msra.mxu0 0.0
        %436 = vmatprep.subr.mxu0 0.0
        %437 = vmatpush1.msra.mxu0 0.0
        %438 = vmatprep.subr.mxu0 0.0
        %439 = vmatpush1.msra.mxu0 0.0
        %440 = vmatprep.subr.mxu0 0.0
        %441 = vmatpush1.msra.mxu0 0.0
        %442 = vmatprep.subr.mxu0 0.0
        %443 = vmatpush1.msra.mxu0 0.0
        %444 = vmatprep.subr.mxu0 0.0
        %445 = vmatpush1.msra.mxu0 0.0
        %446 = vmatprep.subr.mxu0 0.0
        %447 = vmatpush1.msra.mxu0 0.0
        %448 = vmatprep.subr.mxu0 0.0
        %449 = vmatpush1.msra.mxu0 0.0
        %450 = vmatprep.subr.mxu0 0.0
        %451 = vmatpush1.msra.mxu0 0.0
        %452 = vmatprep.subr.mxu0 0.0
        %453 = vmatpush1.msra.mxu0 0.0
        %454 = vmatprep.subr.mxu0 0.0
        %455 = vmatpush1.msra.mxu0 0.0
        %456 = vmatprep.subr.mxu0 0.0
        %457 = vmatpush1.msra.mxu0 %v420
        %458 = vmatprep.subr.mxu0 0.0
        %459 = vmatpush2.msra.mxu0 0.0
        %460 = vmatprep.subr.mxu0 0.0
        %461 = vmatpush2.msra.mxu0 0.0
        %462 = vmatprep.subr.mxu0 0.0
        %463 = vmatpush2.msra.mxu0 0.0
        %464 = vmatprep.subr.mxu0 0.0
        %465 = vmatpush2.msra.mxu0 0.0
        %466 = vmatprep.subr.mxu0 0.0
        %467 = vmatpush2.msra.mxu0 0.0
        %468 = vmatprep.subr.mxu0 0.0
        %469 = vmatpush2.msra.mxu0 0.0
        %470 = vmatprep.subr.mxu0 0.0
        %471 = vmatpush2.msra.mxu0 0.0
        %472 = vmatprep.subr.mxu0 0.0
        %473 = vmatpush2.msra.mxu0 0.0
        %474 = vmatprep.subr.mxu0 0.0
        %475 = vmatpush2.msra.mxu0 0.0
        %476 = vmatprep.subr.mxu0 0.0
        %477 = vmatpush2.msra.mxu0 0.0
        %478 = vmatprep.subr.mxu0 0.0
        %479 = vmatpush2.msra.mxu0 0.0
        %480 = vmatprep.subr.mxu0 0.0
        %481 = vmatpush2.msra.mxu0 0.0
        %482 = vmatprep.subr.mxu0 0.0
        %483 = vmatpush2.msra.mxu0 0.0
        %484 = vmatprep.subr.mxu0 0.0
        %485 = vmatpush2.msra.mxu0 0.0
        %486 = vmatprep.subr.mxu0 0.0
        %487 = vmatpush2.msra.mxu0 0.0
        %488 = vmatprep.subr.mxu0 0.0
        %489 = vmatpush2.msra.mxu0 0.0
        %490 = vmatprep.mubr.f32.mxu0 0.0
        %491 = vmatmul.mubr.f32.gmra.mxu0 %v424
        %v492 = vpop.f32.mrf.mxu0
        %v493 = vadd.f32 0.0, %v492
        %v494 = vpop.f32.mrf.mxu0
        %495 = vdwg.mxu0
        %v496 = vmul.f32 %v493, %v493
        %498 = vrot.lane.b32.xlu0 %v496, 1
        %v499 = vpop.permute.xlu0 %498
        %v501 = vsub.f32 %v493, %v499
        %v502 = vmax.f32 %v501, 0.0
        %v503 = vadd.f32 %v502, 1e-05
        %v504 = vrsqrt.pop %v503
        %506 = vset.pattern.permute.xlu0 0
        %507 = vperm.xlu0 %506, %v493
        %v508 = vpop.permute.xlu0 %507
        %v510 = vsub.f32 %v406, %v508
        %v511 = vsub.f32 %v407, %v508
        %513 = vset.pattern.permute.xlu0 1
        %514 = vperm.xlu0 %513, %v504
        %v515 = vpop.permute.xlu0 %514
        %v517 = vmul.f32 %v510, %v515
        %v518 = vmul.f32 %v511, %v515
        %520 = vset.pattern.permute.xlu0 0
        %521 = vperm.xlu0 %520, %v408
        %v522 = vpop.permute.xlu0 %521
        %v524 = vmul.f32 %v517, %v522
        %v525 = vmul.f32 %v518, %v522
        %526 = vset.pattern.permute.xlu0 1
        %527 = vperm.xlu0 %526, %v408
        %v528 = vpop.permute.xlu0 %527
        %v530 = vadd.f32 %v524, %v528
        %v531 = vadd.f32 %v525, %v528
        %v532 = vmul.f32 %v530, 0.5
        %v533 = vmul.f32 %v531, 0.5
        %v534 = vtanh.pop %v532
        %v535 = vtanh.pop %v533
        %v536 = vadd.f32 %v534, 1.0
        %v537 = vadd.f32 %v535, 1.0
        %v538 = vmul.f32 %v532, %v536
        %v539 = vmul.f32 %v533, %v537
        %v540 = vpack.c.bf16 %v538, %v538
        %v541 = vpack.c.bf16 %v539, %v539
        %544 = vrot.lane.b32.xlu0 %v540, 17
        %v545 = vpop.permute.xlu0 %544
        %546 = vrot.lane.b32.xlu0 %v541, 17
        %v547 = vpop.permute.xlu0 %546
        %vm548 = vcmask 138240
        %v549 = vsel %vm548, %v545, %v547
        %vm551 = vcmask 138240
        %v554 = vsel %vm551, 0, %v545
        %v557 = vsel %vm551, %v547, 0
        %v559 = vld [vmem:[%s2] sm:$0x7]
        %v562 = vunpack.c.l.s4 1966171168
        %v563 = vunpack.c.0.s8 %v562
        %v564 = vlaneseq
        %v565 = vshrl.u32 %v564, 7
        %v566 = vsub.s32 %v563, %v565
        %v567 = vrot.slane %v559, %v566
        %v568 = vcombine.high %v567, %v567
        %v570 = vunpack.c.l.s4 1966171168
        %v571 = vunpack.c.0.s8 %v570
        %v572 = vlaneseq
        %v573 = vshrl.u32 %v572, 7
        %v574 = vsub.s32 %v571, %v573
        %v575 = vrot.slane %v567, %v574
        %v577 = vunpack.c.l.s4 1966171168
        %v578 = vunpack.c.0.s8 %v577
        %v579 = vlaneseq
        %v580 = vshrl.u32 %v579, 7
        %v581 = vsub.s32 %v578, %v580
        %v582 = vrot.slane %v568, %v581
        %v583 = vcombine.high %v575, %v575
        %v585 = vpack.i.b16 %v575, %v575
        %v587 = vlaneseq
        %v588 = vshrl.u32 %v587, 7
        %v589 = vsub.s32 0, %v588
        %v590 = vrot.slane %v585, %v589
        %v592 = vpack.i.b16 %v582, %v582
        %v594 = vlaneseq
        %v595 = vshrl.u32 %v594, 7
        %v596 = vsub.s32 0, %v595
        %v597 = vrot.slane %v592, %v596
        %v599 = vpack.i.b16 %v583, %v583
        %v601 = vlaneseq
        %v602 = vshrl.u32 %v601, 7
        %v603 = vsub.s32 0, %v602
        %v604 = vrot.slane %v599, %v603
        %v605 = vmul.bf16 %v554, %v590
        %v606 = vmul.bf16 %v549, %v597
        %v607 = vmul.bf16 %v557, %v604
        %v608 = vshrl.u32 %v575, 16
        %v609 = vpack.i.b16 %v608, %v608
        %v611 = vlaneseq
        %v612 = vshrl.u32 %v611, 7
        %v613 = vsub.s32 0, %v612
        %v614 = vrot.slane %v609, %v613
        %v615 = vshrl.u32 %v582, 16
        %v616 = vpack.i.b16 %v615, %v615
        %v618 = vlaneseq
        %v619 = vshrl.u32 %v618, 7
        %v620 = vsub.s32 0, %v619
        %v621 = vrot.slane %v616, %v620
        %v622 = vshrl.u32 %v583, 16
        %v623 = vpack.i.b16 %v622, %v622
        %v625 = vlaneseq
        %v626 = vshrl.u32 %v625, 7
        %v627 = vsub.s32 0, %v626
        %v628 = vrot.slane %v623, %v627
        %v629 = vmul.bf16 %v554, %v614
        %v630 = vmul.bf16 %v549, %v621
        %v631 = vmul.bf16 %v557, %v628
        %v632 = vld [vmem:[%s7] sm:$0xf]
        %v633 = vld [vmem:[%s7 + $0x4] sm:$0xf]
        %s634 = scalar_lea.vmem %s7, 8
        %v635 = vld [vmem:[%s634] sm:$0xf]
        %v636 = vld [vmem:[%s634 + $0x4] sm:$0xf]
        %v639 = vunpack.c.l.b16 %v635
        %v640 = vunpack.c.l.b16 %v636
        %v641 = vpack.c.b16 %v640, %v639
        %644 = vrot.lane.b32.xlu0 %v554, 127
        %v645 = vpop.permute.xlu0 %644
        %646 = vrot.lane.b32.xlu0 %v549, 127
        %v647 = vpop.permute.xlu0 %646
        %648 = vrot.lane.b32.xlu0 %v557, 127
        %v649 = vpop.permute.xlu0 %648
        %vm650 = vcmask 1039360
        %v651 = vsel %vm650, %v645, %v647
        %v652 = vsel %vm650, %v647, %v649
        %v654 = vsel %vm422, %v641, 0
        %vm656 = vcmask 1043456
        %v658 = vsel %vm656, %v651, 0
        %v661 = vsel %vm656, %v652, 0
        %663 = vmatprep.subr.bf16.mxu0 0
        %664 = vmatpush1.bf16.msra.mxu0 0
        %665 = vmatprep.subr.bf16.mxu0 0
        %666 = vmatpush1.bf16.msra.mxu0 0
        %667 = vmatprep.subr.bf16.mxu0 0
        %668 = vmatpush1.bf16.msra.mxu0 0
        %669 = vmatprep.subr.bf16.mxu0 0
        %670 = vmatpush1.bf16.msra.mxu0 0
        %671 = vmatprep.subr.bf16.mxu0 0
        %672 = vmatpush1.bf16.msra.mxu0 0
        %673 = vmatprep.subr.bf16.mxu0 0
        %674 = vmatpush1.bf16.msra.mxu0 0
        %675 = vmatprep.subr.bf16.mxu0 0
        %676 = vmatpush1.bf16.msra.mxu0 0
        %677 = vmatprep.subr.bf16.mxu0 %v661
        %678 = vmatpush1.bf16.msra.mxu0 %v658
        %679 = vmatprep.subr.bf16.mxu0 0
        %680 = vmatpush2.bf16.msra.mxu0 0
        %681 = vmatprep.subr.bf16.mxu0 0
        %682 = vmatpush2.bf16.msra.mxu0 0
        %683 = vmatprep.subr.bf16.mxu0 0
        %684 = vmatpush2.bf16.msra.mxu0 0
        %685 = vmatprep.subr.bf16.mxu0 0
        %686 = vmatpush2.bf16.msra.mxu0 0
        %687 = vmatprep.subr.bf16.mxu0 0
        %688 = vmatpush2.bf16.msra.mxu0 0
        %689 = vmatprep.subr.bf16.mxu0 0
        %690 = vmatpush2.bf16.msra.mxu0 0
        %691 = vmatprep.subr.bf16.mxu0 0
        %692 = vmatpush2.bf16.msra.mxu0 0
        %693 = vmatprep.subr.bf16.mxu0 0
        %694 = vmatpush2.bf16.msra.mxu0 0
        %695 = vmatprep.mubr.bf16.mxu0 0
        %696 = vmatmul.mubr.bf16.gmra.mxu0 %v654
        %v697 = vpop.f32.mrf.mxu0
        %v698 = vadd.f32 0.0, %v697
        %v699 = vpop.f32.mrf.mxu0
        %v700 = vadd.f32 0.0, %v699
        %v701 = vpop.f32.mrf.mxu0
        %v702 = vadd.f32 0.0, %v701
        %v703 = vpop.f32.mrf.mxu0
        %v704 = vadd.f32 0.0, %v703
        %705 = vdwg.mxu0
        %v708 = vunpack.c.l.b16 %v632
        %v709 = vunpack.c.l.b16 %v633
        %v710 = vpack.c.b16 %v709, %v708
        %v712 = vsel %vm422, %v710, 0
        %v715 = vsel %vm656, %v605, 0
        %v718 = vsel %vm656, %v606, 0
        %720 = vmatprep.subr.bf16.mxu0 0
        %721 = vmatpush1.bf16.msra.mxu0 0
        %722 = vmatprep.subr.bf16.mxu0 0
        %723 = vmatpush1.bf16.msra.mxu0 0
        %724 = vmatprep.subr.bf16.mxu0 0
        %725 = vmatpush1.bf16.msra.mxu0 0
        %726 = vmatprep.subr.bf16.mxu0 0
        %727 = vmatpush1.bf16.msra.mxu0 0
        %728 = vmatprep.subr.bf16.mxu0 0
        %729 = vmatpush1.bf16.msra.mxu0 0
        %730 = vmatprep.subr.bf16.mxu0 0
        %731 = vmatpush1.bf16.msra.mxu0 0
        %732 = vmatprep.subr.bf16.mxu0 0
        %733 = vmatpush1.bf16.msra.mxu0 0
        %734 = vmatprep.subr.bf16.mxu0 %v718
        %735 = vmatpush1.bf16.msra.mxu0 %v715
        %736 = vmatprep.subr.bf16.mxu0 0
        %737 = vmatpush2.bf16.msra.mxu0 0
        %738 = vmatprep.subr.bf16.mxu0 0
        %739 = vmatpush2.bf16.msra.mxu0 0
        %740 = vmatprep.subr.bf16.mxu0 0
        %741 = vmatpush2.bf16.msra.mxu0 0
        %742 = vmatprep.subr.bf16.mxu0 0
        %743 = vmatpush2.bf16.msra.mxu0 0
        %744 = vmatprep.subr.bf16.mxu0 0
        %745 = vmatpush2.bf16.msra.mxu0 0
        %746 = vmatprep.subr.bf16.mxu0 0
        %747 = vmatpush2.bf16.msra.mxu0 0
        %748 = vmatprep.subr.bf16.mxu0 0
        %749 = vmatpush2.bf16.msra.mxu0 0
        %750 = vmatprep.subr.bf16.mxu0 0
        %751 = vmatpush2.bf16.msra.mxu0 0
        %752 = vmatprep.mubr.bf16.mxu0 0
        %753 = vmatmul.mubr.bf16.gmra.mxu0 %v712
        %v754 = vpop.f32.mrf.mxu0
        %v755 = vadd.f32 %v698, %v754
        %v756 = vpop.f32.mrf.mxu0
        %v757 = vadd.f32 %v700, %v756
        %v758 = vpop.f32.mrf.mxu0
        %v759 = vadd.f32 %v702, %v758
        %v760 = vpop.f32.mrf.mxu0
        %v761 = vadd.f32 %v704, %v760
        %762 = vdwg.mxu0
        %s763 = scalar_lea.vmem %s7, 16
        %v764 = vld [vmem:[%s763] sm:$0xf]
        %v765 = vld [vmem:[%s763 + $0x4] sm:$0xf]
        %v768 = vunpack.c.l.b16 %v764
        %v769 = vunpack.c.l.b16 %v765
        %v770 = vpack.c.b16 %v769, %v768
        %774 = vrot.lane.b32.xlu0 %v629, 126
        %v775 = vpop.permute.xlu0 %774
        %776 = vrot.lane.b32.xlu0 %v630, 126
        %v777 = vpop.permute.xlu0 %776
        %778 = vrot.lane.b32.xlu0 %v631, 126
        %v779 = vpop.permute.xlu0 %778
        %vm780 = vcmask 1031168
        %v781 = vsel %vm780, %v775, %v777
        %v782 = vsel %vm780, %v777, %v779
        %v784 = vsel %vm422, %v770, 0
        %v787 = vsel %vm656, %v781, 0
        %v790 = vsel %vm656, %v782, 0
        %792 = vmatprep.subr.bf16.mxu0 0
        %793 = vmatpush1.bf16.msra.mxu0 0
        %794 = vmatprep.subr.bf16.mxu0 0
        %795 = vmatpush1.bf16.msra.mxu0 0
        %796 = vmatprep.subr.bf16.mxu0 0
        %797 = vmatpush1.bf16.msra.mxu0 0
        %798 = vmatprep.subr.bf16.mxu0 0
        %799 = vmatpush1.bf16.msra.mxu0 0
        %800 = vmatprep.subr.bf16.mxu0 0
        %801 = vmatpush1.bf16.msra.mxu0 0
        %802 = vmatprep.subr.bf16.mxu0 0
        %803 = vmatpush1.bf16.msra.mxu0 0
        %804 = vmatprep.subr.bf16.mxu0 0
        %805 = vmatpush1.bf16.msra.mxu0 0
        %806 = vmatprep.subr.bf16.mxu0 %v790
        %807 = vmatpush1.bf16.msra.mxu0 %v787
        %808 = vmatprep.subr.bf16.mxu0 0
        %809 = vmatpush2.bf16.msra.mxu0 0
        %810 = vmatprep.subr.bf16.mxu0 0
        %811 = vmatpush2.bf16.msra.mxu0 0
        %812 = vmatprep.subr.bf16.mxu0 0
        %813 = vmatpush2.bf16.msra.mxu0 0
        %814 = vmatprep.subr.bf16.mxu0 0
        %815 = vmatpush2.bf16.msra.mxu0 0
        %816 = vmatprep.subr.bf16.mxu0 0
        %817 = vmatpush2.bf16.msra.mxu0 0
        %818 = vmatprep.subr.bf16.mxu0 0
        %819 = vmatpush2.bf16.msra.mxu0 0
        %820 = vmatprep.subr.bf16.mxu0 0
        %821 = vmatpush2.bf16.msra.mxu0 0
        %822 = vmatprep.subr.bf16.mxu0 0
        %823 = vmatpush2.bf16.msra.mxu0 0
        %824 = vmatprep.mubr.bf16.mxu0 0
        %825 = vmatmul.mubr.bf16.gmra.mxu0 %v784
        %v826 = vpop.f32.mrf.mxu0
        %v827 = vadd.f32 0.0, %v826
        %v828 = vpop.f32.mrf.mxu0
        %v829 = vadd.f32 0.0, %v828
        %v830 = vpop.f32.mrf.mxu0
        %v831 = vadd.f32 0.0, %v830
        %v832 = vpop.f32.mrf.mxu0
        %v833 = vadd.f32 0.0, %v832
        %834 = vdwg.mxu0
        %v835 = vadd.f32 %v755, %v827
        %v836 = vadd.f32 %v757, %v829
        %v837 = vadd.f32 %v759, %v831
        %v838 = vadd.f32 %v761, %v833
        %s839 = scalar_lea.vmem %s7, 24
        %v840 = vld [vmem:[%s839] sm:$0xf]
        %v841 = vld [vmem:[%s839 + $0x4] sm:$0xf]
        %v844 = vunpack.c.l.b16 %v840
        %v845 = vunpack.c.l.b16 %v841
        %v846 = vpack.c.b16 %v845, %v844
        %850 = vrot.lane.b32.xlu0 %v605, 112
        %v851 = vpop.permute.xlu0 %850
        %852 = vrot.lane.b32.xlu0 %v606, 112
        %v853 = vpop.permute.xlu0 %852
        %854 = vrot.lane.b32.xlu0 %v607, 112
        %v855 = vpop.permute.xlu0 %854
        %vm856 = vcmask 916480
        %v857 = vsel %vm856, %v851, %v853
        %v858 = vsel %vm856, %v853, %v855
        %v860 = vsel %vm422, %v846, 0
        %v863 = vsel %vm656, %v857, 0
        %v866 = vsel %vm656, %v858, 0
        %868 = vmatprep.subr.bf16.mxu0 0
        %869 = vmatpush1.bf16.msra.mxu0 0
        %870 = vmatprep.subr.bf16.mxu0 0
        %871 = vmatpush1.bf16.msra.mxu0 0
        %872 = vmatprep.subr.bf16.mxu0 0
        %873 = vmatpush1.bf16.msra.mxu0 0
        %874 = vmatprep.subr.bf16.mxu0 0
        %875 = vmatpush1.bf16.msra.mxu0 0
        %876 = vmatprep.subr.bf16.mxu0 0
        %877 = vmatpush1.bf16.msra.mxu0 0
        %878 = vmatprep.subr.bf16.mxu0 0
        %879 = vmatpush1.bf16.msra.mxu0 0
        %880 = vmatprep.subr.bf16.mxu0 0
        %881 = vmatpush1.bf16.msra.mxu0 0
        %882 = vmatprep.subr.bf16.mxu0 %v866
        %883 = vmatpush1.bf16.msra.mxu0 %v863
        %884 = vmatprep.subr.bf16.mxu0 0
        %885 = vmatpush2.bf16.msra.mxu0 0
        %886 = vmatprep.subr.bf16.mxu0 0
        %887 = vmatpush2.bf16.msra.mxu0 0
        %888 = vmatprep.subr.bf16.mxu0 0
        %889 = vmatpush2.bf16.msra.mxu0 0
        %890 = vmatprep.subr.bf16.mxu0 0
        %891 = vmatpush2.bf16.msra.mxu0 0
        %892 = vmatprep.subr.bf16.mxu0 0
        %893 = vmatpush2.bf16.msra.mxu0 0
        %894 = vmatprep.subr.bf16.mxu0 0
        %895 = vmatpush2.bf16.msra.mxu0 0
        %896 = vmatprep.subr.bf16.mxu0 0
        %897 = vmatpush2.bf16.msra.mxu0 0
        %898 = vmatprep.subr.bf16.mxu0 0
        %899 = vmatpush2.bf16.msra.mxu0 0
        %900 = vmatprep.mubr.bf16.mxu0 0
        %901 = vmatmul.mubr.bf16.gmra.mxu0 %v860
        %v902 = vpop.f32.mrf.mxu0
        %v903 = vadd.f32 0.0, %v902
        %v904 = vpop.f32.mrf.mxu0
        %v905 = vadd.f32 0.0, %v904
        %v906 = vpop.f32.mrf.mxu0
        %v907 = vadd.f32 0.0, %v906
        %v908 = vpop.f32.mrf.mxu0
        %v909 = vadd.f32 0.0, %v908
        %910 = vdwg.mxu0
        %v911 = vadd.f32 %v835, %v903
        %v912 = vadd.f32 %v836, %v905
        %v913 = vadd.f32 %v837, %v907
        %v914 = vadd.f32 %v838, %v909
        %s915 = scalar_lea.vmem %s7, 32
        %v916 = vld [vmem:[%s915] sm:$0xf]
        %v917 = vld [vmem:[%s915 + $0x4] sm:$0xf]
        %v920 = vunpack.c.l.b16 %v916
        %v921 = vunpack.c.l.b16 %v917
        %v922 = vpack.c.b16 %v921, %v920
        %923 = vrot.lane.b32.xlu0 %v554, 111
        %v924 = vpop.permute.xlu0 %923
        %925 = vrot.lane.b32.xlu0 %v549, 111
        %v926 = vpop.permute.xlu0 %925
        %927 = vrot.lane.b32.xlu0 %v557, 111
        %v928 = vpop.permute.xlu0 %927
        %vm929 = vcmask 908288
        %v930 = vsel %vm929, %v924, %v926
        %v931 = vsel %vm929, %v926, %v928
        %v933 = vsel %vm422, %v922, 0
        %v936 = vsel %vm656, %v930, 0
        %v939 = vsel %vm656, %v931, 0
        %941 = vmatprep.subr.bf16.mxu0 0
        %942 = vmatpush1.bf16.msra.mxu0 0
        %943 = vmatprep.subr.bf16.mxu0 0
        %944 = vmatpush1.bf16.msra.mxu0 0
        %945 = vmatprep.subr.bf16.mxu0 0
        %946 = vmatpush1.bf16.msra.mxu0 0
        %947 = vmatprep.subr.bf16.mxu0 0
        %948 = vmatpush1.bf16.msra.mxu0 0
        %949 = vmatprep.subr.bf16.mxu0 0
        %950 = vmatpush1.bf16.msra.mxu0 0
        %951 = vmatprep.subr.bf16.mxu0 0
        %952 = vmatpush1.bf16.msra.mxu0 0
        %953 = vmatprep.subr.bf16.mxu0 0
        %954 = vmatpush1.bf16.msra.mxu0 0
        %955 = vmatprep.subr.bf16.mxu0 %v939
        %956 = vmatpush1.bf16.msra.mxu0 %v936
        %957 = vmatprep.subr.bf16.mxu0 0
        %958 = vmatpush2.bf16.msra.mxu0 0
        %959 = vmatprep.subr.bf16.mxu0 0
        %960 = vmatpush2.bf16.msra.mxu0 0
        %961 = vmatprep.subr.bf16.mxu0 0
        %962 = vmatpush2.bf16.msra.mxu0 0
        %963 = vmatprep.subr.bf16.mxu0 0
        %964 = vmatpush2.bf16.msra.mxu0 0
        %965 = vmatprep.subr.bf16.mxu0 0
        %966 = vmatpush2.bf16.msra.mxu0 0
        %967 = vmatprep.subr.bf16.mxu0 0
        %968 = vmatpush2.bf16.msra.mxu0 0
        %969 = vmatprep.subr.bf16.mxu0 0
        %970 = vmatpush2.bf16.msra.mxu0 0
        %971 = vmatprep.subr.bf16.mxu0 0
        %972 = vmatpush2.bf16.msra.mxu0 0
        %973 = vmatprep.mubr.bf16.mxu0 0
        %974 = vmatmul.mubr.bf16.gmra.mxu0 %v933
        %v975 = vpop.f32.mrf.mxu0
        %v976 = vadd.f32 0.0, %v975
        %v977 = vpop.f32.mrf.mxu0
        %v978 = vadd.f32 0.0, %v977
        %v979 = vpop.f32.mrf.mxu0
        %v980 = vadd.f32 0.0, %v979
        %v981 = vpop.f32.mrf.mxu0
        %v982 = vadd.f32 0.0, %v981
        %983 = vdwg.mxu0
        %v984 = vadd.f32 %v911, %v976
        %v985 = vadd.f32 %v912, %v978
        %v986 = vadd.f32 %v913, %v980
        %v987 = vadd.f32 %v914, %v982
        %s988 = scalar_lea.vmem %s7, 40
        %v989 = vld [vmem:[%s988] sm:$0xf]
        %v990 = vld [vmem:[%s988 + $0x4] sm:$0xf]
        %v993 = vunpack.c.l.b16 %v989
        %v994 = vunpack.c.l.b16 %v990
        %v995 = vpack.c.b16 %v994, %v993
        %996 = vrot.lane.b32.xlu0 %v629, 110
        %v997 = vpop.permute.xlu0 %996
        %998 = vrot.lane.b32.xlu0 %v630, 110
        %v999 = vpop.permute.xlu0 %998
        %1000 = vrot.lane.b32.xlu0 %v631, 110
        %v1001 = vpop.permute.xlu0 %1000
        %vm1002 = vcmask 900096
        %v1003 = vsel %vm1002, %v997, %v999
        %v1004 = vsel %vm1002, %v999, %v1001
        %v1006 = vsel %vm422, %v995, 0
        %v1009 = vsel %vm656, %v1003, 0
        %v1012 = vsel %vm656, %v1004, 0
        %1014 = vmatprep.subr.bf16.mxu0 0
        %1015 = vmatpush1.bf16.msra.mxu0 0
        %1016 = vmatprep.subr.bf16.mxu0 0
        %1017 = vmatpush1.bf16.msra.mxu0 0
        %1018 = vmatprep.subr.bf16.mxu0 0
        %1019 = vmatpush1.bf16.msra.mxu0 0
        %1020 = vmatprep.subr.bf16.mxu0 0
        %1021 = vmatpush1.bf16.msra.mxu0 0
        %1022 = vmatprep.subr.bf16.mxu0 0
        %1023 = vmatpush1.bf16.msra.mxu0 0
        %1024 = vmatprep.subr.bf16.mxu0 0
        %1025 = vmatpush1.bf16.msra.mxu0 0
        %1026 = vmatprep.subr.bf16.mxu0 0
        %1027 = vmatpush1.bf16.msra.mxu0 0
        %1028 = vmatprep.subr.bf16.mxu0 %v1012
        %1029 = vmatpush1.bf16.msra.mxu0 %v1009
        %1030 = vmatprep.subr.bf16.mxu0 0
        %1031 = vmatpush2.bf16.msra.mxu0 0
        %1032 = vmatprep.subr.bf16.mxu0 0
        %1033 = vmatpush2.bf16.msra.mxu0 0
        %1034 = vmatprep.subr.bf16.mxu0 0
        %1035 = vmatpush2.bf16.msra.mxu0 0
        %1036 = vmatprep.subr.bf16.mxu0 0
        %1037 = vmatpush2.bf16.msra.mxu0 0
        %1038 = vmatprep.subr.bf16.mxu0 0
        %1039 = vmatpush2.bf16.msra.mxu0 0
        %1040 = vmatprep.subr.bf16.mxu0 0
        %1041 = vmatpush2.bf16.msra.mxu0 0
        %1042 = vmatprep.subr.bf16.mxu0 0
        %1043 = vmatpush2.bf16.msra.mxu0 0
        %1044 = vmatprep.subr.bf16.mxu0 0
        %1045 = vmatpush2.bf16.msra.mxu0 0
        %1046 = vmatprep.mubr.bf16.mxu0 0
        %1047 = vmatmul.mubr.bf16.gmra.mxu0 %v1006
        %v1048 = vpop.f32.mrf.mxu0
        %v1049 = vadd.f32 0.0, %v1048
        %v1050 = vpop.f32.mrf.mxu0
        %v1051 = vadd.f32 0.0, %v1050
        %v1052 = vpop.f32.mrf.mxu0
        %v1053 = vadd.f32 0.0, %v1052
        %v1054 = vpop.f32.mrf.mxu0
        %v1055 = vadd.f32 0.0, %v1054
        %1056 = vdwg.mxu0
        %v1057 = vadd.f32 %v984, %v1049
        %v1058 = vadd.f32 %v985, %v1051
        %v1059 = vadd.f32 %v986, %v1053
        %v1060 = vadd.f32 %v987, %v1055
        %s1061 = scalar_lea.vmem %s7, 48
        %v1062 = vld [vmem:[%s1061] sm:$0xf]
        %v1063 = vld [vmem:[%s1061 + $0x4] sm:$0xf]
        %v1066 = vunpack.c.l.b16 %v1062
        %v1067 = vunpack.c.l.b16 %v1063
        %v1068 = vpack.c.b16 %v1067, %v1066
        %1069 = vrot.lane.b32.xlu0 %v605, 96
        %v1070 = vpop.permute.xlu0 %1069
        %1071 = vrot.lane.b32.xlu0 %v606, 96
        %v1072 = vpop.permute.xlu0 %1071
        %1073 = vrot.lane.b32.xlu0 %v607, 96
        %v1074 = vpop.permute.xlu0 %1073
        %vm1075 = vcmask 785408
        %v1076 = vsel %vm1075, %v1070, %v1072
        %v1077 = vsel %vm1075, %v1072, %v1074
        %v1079 = vsel %vm422, %v1068, 0
        %v1082 = vsel %vm656, %v1076, 0
        %v1085 = vsel %vm656, %v1077, 0
        %1087 = vmatprep.subr.bf16.mxu0 0
        %1088 = vmatpush1.bf16.msra.mxu0 0
        %1089 = vmatprep.subr.bf16.mxu0 0
        %1090 = vmatpush1.bf16.msra.mxu0 0
        %1091 = vmatprep.subr.bf16.mxu0 0
        %1092 = vmatpush1.bf16.msra.mxu0 0
        %1093 = vmatprep.subr.bf16.mxu0 0
        %1094 = vmatpush1.bf16.msra.mxu0 0
        %1095 = vmatprep.subr.bf16.mxu0 0
        %1096 = vmatpush1.bf16.msra.mxu0 0
        %1097 = vmatprep.subr.bf16.mxu0 0
        %1098 = vmatpush1.bf16.msra.mxu0 0
        %1099 = vmatprep.subr.bf16.mxu0 0
        %1100 = vmatpush1.bf16.msra.mxu0 0
        %1101 = vmatprep.subr.bf16.mxu0 %v1085
        %1102 = vmatpush1.bf16.msra.mxu0 %v1082
        %1103 = vmatprep.subr.bf16.mxu0 0
        %1104 = vmatpush2.bf16.msra.mxu0 0
        %1105 = vmatprep.subr.bf16.mxu0 0
        %1106 = vmatpush2.bf16.msra.mxu0 0
        %1107 = vmatprep.subr.bf16.mxu0 0
        %1108 = vmatpush2.bf16.msra.mxu0 0
        %1109 = vmatprep.subr.bf16.mxu0 0
        %1110 = vmatpush2.bf16.msra.mxu0 0
        %1111 = vmatprep.subr.bf16.mxu0 0
        %1112 = vmatpush2.bf16.msra.mxu0 0
        %1113 = vmatprep.subr.bf16.mxu0 0
        %1114 = vmatpush2.bf16.msra.mxu0 0
        %1115 = vmatprep.subr.bf16.mxu0 0
        %1116 = vmatpush2.bf16.msra.mxu0 0
        %1117 = vmatprep.subr.bf16.mxu0 0
        %1118 = vmatpush2.bf16.msra.mxu0 0
        %1119 = vmatprep.mubr.bf16.mxu0 0
        %1120 = vmatmul.mubr.bf16.gmra.mxu0 %v1079
        %v1121 = vpop.f32.mrf.mxu0
        %v1122 = vadd.f32 0.0, %v1121
        %v1123 = vpop.f32.mrf.mxu0
        %v1124 = vadd.f32 0.0, %v1123
        %v1125 = vpop.f32.mrf.mxu0
        %v1126 = vadd.f32 0.0, %v1125
        %v1127 = vpop.f32.mrf.mxu0
        %v1128 = vadd.f32 0.0, %v1127
        %1129 = vdwg.mxu0
        %v1130 = vadd.f32 %v1057, %v1122
        %v1131 = vadd.f32 %v1058, %v1124
        %v1132 = vadd.f32 %v1059, %v1126
        %v1133 = vadd.f32 %v1060, %v1128
        %s1134 = scalar_lea.vmem %s7, 56
        %v1135 = vld [vmem:[%s1134] sm:$0xf]
        %v1136 = vld [vmem:[%s1134 + $0x4] sm:$0xf]
        %v1139 = vunpack.c.l.b16 %v1135
        %v1140 = vunpack.c.l.b16 %v1136
        %v1141 = vpack.c.b16 %v1140, %v1139
        %1142 = vrot.lane.b32.xlu0 %v554, 95
        %v1143 = vpop.permute.xlu0 %1142
        %1144 = vrot.lane.b32.xlu0 %v549, 95
        %v1145 = vpop.permute.xlu0 %1144
        %1146 = vrot.lane.b32.xlu0 %v557, 95
        %v1147 = vpop.permute.xlu0 %1146
        %vm1148 = vcmask 777216
        %v1149 = vsel %vm1148, %v1143, %v1145
        %v1150 = vsel %vm1148, %v1145, %v1147
        %v1152 = vsel %vm422, %v1141, 0
        %v1155 = vsel %vm656, %v1149, 0
        %v1158 = vsel %vm656, %v1150, 0
        %1160 = vmatprep.subr.bf16.mxu0 0
        %1161 = vmatpush1.bf16.msra.mxu0 0
        %1162 = vmatprep.subr.bf16.mxu0 0
        %1163 = vmatpush1.bf16.msra.mxu0 0
        %1164 = vmatprep.subr.bf16.mxu0 0
        %1165 = vmatpush1.bf16.msra.mxu0 0
        %1166 = vmatprep.subr.bf16.mxu0 0
        %1167 = vmatpush1.bf16.msra.mxu0 0
        %1168 = vmatprep.subr.bf16.mxu0 0
        %1169 = vmatpush1.bf16.msra.mxu0 0
        %1170 = vmatprep.subr.bf16.mxu0 0
        %1171 = vmatpush1.bf16.msra.mxu0 0
        %1172 = vmatprep.subr.bf16.mxu0 0
        %1173 = vmatpush1.bf16.msra.mxu0 0
        %1174 = vmatprep.subr.bf16.mxu0 %v1158
        %1175 = vmatpush1.bf16.msra.mxu0 %v1155
        %1176 = vmatprep.subr.bf16.mxu0 0
        %1177 = vmatpush2.bf16.msra.mxu0 0
        %1178 = vmatprep.subr.bf16.mxu0 0
        %1179 = vmatpush2.bf16.msra.mxu0 0
        %1180 = vmatprep.subr.bf16.mxu0 0
        %1181 = vmatpush2.bf16.msra.mxu0 0
        %1182 = vmatprep.subr.bf16.mxu0 0
        %1183 = vmatpush2.bf16.msra.mxu0 0
        %1184 = vmatprep.subr.bf16.mxu0 0
        %1185 = vmatpush2.bf16.msra.mxu0 0
        %1186 = vmatprep.subr.bf16.mxu0 0
        %1187 = vmatpush2.bf16.msra.mxu0 0
        %1188 = vmatprep.subr.bf16.mxu0 0
        %1189 = vmatpush2.bf16.msra.mxu0 0
        %1190 = vmatprep.subr.bf16.mxu0 0
        %1191 = vmatpush2.bf16.msra.mxu0 0
        %1192 = vmatprep.mubr.bf16.mxu0 0
        %1193 = vmatmul.mubr.bf16.gmra.mxu0 %v1152
        %v1194 = vpop.f32.mrf.mxu0
        %v1195 = vadd.f32 0.0, %v1194
        %v1196 = vpop.f32.mrf.mxu0
        %v1197 = vadd.f32 0.0, %v1196
        %v1198 = vpop.f32.mrf.mxu0
        %v1199 = vadd.f32 0.0, %v1198
        %v1200 = vpop.f32.mrf.mxu0
        %v1201 = vadd.f32 0.0, %v1200
        %1202 = vdwg.mxu0
        %v1203 = vadd.f32 %v1130, %v1195
        %v1204 = vadd.f32 %v1131, %v1197
        %v1205 = vadd.f32 %v1132, %v1199
        %v1206 = vadd.f32 %v1133, %v1201
        %s1207 = scalar_lea.vmem %s7, 64
        %v1208 = vld [vmem:[%s1207] sm:$0xf]
        %v1209 = vld [vmem:[%s1207 + $0x4] sm:$0xf]
        %v1212 = vunpack.c.l.b16 %v1208
        %v1213 = vunpack.c.l.b16 %v1209
        %v1214 = vpack.c.b16 %v1213, %v1212
        %1215 = vrot.lane.b32.xlu0 %v629, 94
        %v1216 = vpop.permute.xlu0 %1215
        %1217 = vrot.lane.b32.xlu0 %v630, 94
        %v1218 = vpop.permute.xlu0 %1217
        %1219 = vrot.lane.b32.xlu0 %v631, 94
        %v1220 = vpop.permute.xlu0 %1219
        %vm1221 = vcmask 769024
        %v1222 = vsel %vm1221, %v1216, %v1218
        %v1223 = vsel %vm1221, %v1218, %v1220
        %v1225 = vsel %vm422, %v1214, 0
        %v1228 = vsel %vm656, %v1222, 0
        %v1231 = vsel %vm656, %v1223, 0
        %1233 = vmatprep.subr.bf16.mxu0 0
        %1234 = vmatpush1.bf16.msra.mxu0 0
        %1235 = vmatprep.subr.bf16.mxu0 0
        %1236 = vmatpush1.bf16.msra.mxu0 0
        %1237 = vmatprep.subr.bf16.mxu0 0
        %1238 = vmatpush1.bf16.msra.mxu0 0
        %1239 = vmatprep.subr.bf16.mxu0 0
        %1240 = vmatpush1.bf16.msra.mxu0 0
        %1241 = vmatprep.subr.bf16.mxu0 0
        %1242 = vmatpush1.bf16.msra.mxu0 0
        %1243 = vmatprep.subr.bf16.mxu0 0
        %1244 = vmatpush1.bf16.msra.mxu0 0
        %1245 = vmatprep.subr.bf16.mxu0 0
        %1246 = vmatpush1.bf16.msra.mxu0 0
        %1247 = vmatprep.subr.bf16.mxu0 %v1231
        %1248 = vmatpush1.bf16.msra.mxu0 %v1228
        %1249 = vmatprep.subr.bf16.mxu0 0
        %1250 = vmatpush2.bf16.msra.mxu0 0
        %1251 = vmatprep.subr.bf16.mxu0 0
        %1252 = vmatpush2.bf16.msra.mxu0 0
        %1253 = vmatprep.subr.bf16.mxu0 0
        %1254 = vmatpush2.bf16.msra.mxu0 0
        %1255 = vmatprep.subr.bf16.mxu0 0
        %1256 = vmatpush2.bf16.msra.mxu0 0
        %1257 = vmatprep.subr.bf16.mxu0 0
        %1258 = vmatpush2.bf16.msra.mxu0 0
        %1259 = vmatprep.subr.bf16.mxu0 0
        %1260 = vmatpush2.bf16.msra.mxu0 0
        %1261 = vmatprep.subr.bf16.mxu0 0
        %1262 = vmatpush2.bf16.msra.mxu0 0
        %1263 = vmatprep.subr.bf16.mxu0 0
        %1264 = vmatpush2.bf16.msra.mxu0 0
        %1265 = vmatprep.mubr.bf16.mxu0 0
        %1266 = vmatmul.mubr.bf16.gmra.mxu0 %v1225
        %v1267 = vpop.f32.mrf.mxu0
        %v1268 = vadd.f32 0.0, %v1267
        %v1269 = vpop.f32.mrf.mxu0
        %v1270 = vadd.f32 0.0, %v1269
        %v1271 = vpop.f32.mrf.mxu0
        %v1272 = vadd.f32 0.0, %v1271
        %v1273 = vpop.f32.mrf.mxu0
        %v1274 = vadd.f32 0.0, %v1273
        %1275 = vdwg.mxu0
        %v1276 = vadd.f32 %v1203, %v1268
        %v1277 = vadd.f32 %v1204, %v1270
        %v1278 = vadd.f32 %v1205, %v1272
        %v1279 = vadd.f32 %v1206, %v1274
        %1281 = vset.pattern.permute.xlu0 0
        %1282 = vperm.xlu0 %1281, %v409
        %v1283 = vpop.permute.xlu0 %1282
        %1286 = vset.pattern.permute.xlu0 0
        %1287 = vperm.xlu0 %1286, %v410
        %v1288 = vpop.permute.xlu0 %1287
        %v1290 = vadd.f32 %v1276, %v1283
        %v1291 = vadd.f32 %v1277, %v1283
        %v1292 = vadd.f32 %v1278, %v1288
        %v1293 = vadd.f32 %v1279, %v1288
        %v1294 = vld [vmem:[%s404] sm:$0xff]
        %v1295 = vld [vmem:[%s404 + $0x8] sm:$0xff]
        %v1296 = vld [vmem:[%s404 + $0x10] sm:$0xff]
        %v1297 = vld [vmem:[%s404 + $0x18] sm:$0xff]
        %v1298 = vmul.f32 %v1294, 0.5
        %v1299 = vmul.f32 %v1295, 0.5
        %v1300 = vmul.f32 %v1296, 0.5
        %v1301 = vmul.f32 %v1297, 0.5
        %v1302 = vtanh.pop %v1298
        %v1303 = vtanh.pop %v1299
        %v1304 = vtanh.pop %v1300
        %v1305 = vtanh.pop %v1301
        %v1306 = vadd.f32 %v1302, 1.0
        %v1307 = vadd.f32 %v1303, 1.0
        %v1308 = vadd.f32 %v1304, 1.0
        %v1309 = vadd.f32 %v1305, 1.0
        %v1310 = vmul.f32 %v1298, %v1306
        %v1311 = vmul.f32 %v1299, %v1307
        %v1312 = vmul.f32 %v1300, %v1308
        %v1313 = vmul.f32 %v1301, %v1309
        %v1314 = vld [vmem:[%s8] sm:$0xff]
        %v1315 = vld [vmem:[%s8 + $0x8] sm:$0xff]
        %1316 = vrot.lane.b32.xlu0 %v409, 127
        %v1317 = vpop.permute.xlu0 %1316
        %1318 = vrot.lane.b32.xlu0 %v410, 127
        %v1319 = vpop.permute.xlu0 %1318
        %vm1322 = vcmask 261120
        %v1324 = vsel %vm1322, %v1314, 0
        %v1327 = vsel %vm1322, %v1315, 0
        %1329 = vmatprep.subr.mxu0 0.0
        %1330 = vmatpush1.msra.mxu0 0.0
        %1331 = vmatprep.subr.mxu0 0.0
        %1332 = vmatpush1.msra.mxu0 0.0
        %1333 = vmatprep.subr.mxu0 0.0
        %1334 = vmatpush1.msra.mxu0 0.0
        %1335 = vmatprep.subr.mxu0 0.0
        %1336 = vmatpush1.msra.mxu0 0.0
        %1337 = vmatprep.subr.mxu0 0.0
        %1338 = vmatpush1.msra.mxu0 0.0
        %1339 = vmatprep.subr.mxu0 0.0
        %1340 = vmatpush1.msra.mxu0 0.0
        %1341 = vmatprep.subr.mxu0 0.0
        %1342 = vmatpush1.msra.mxu0 0.0
        %1343 = vmatprep.subr.mxu0 0.0
        %1344 = vmatpush1.msra.mxu0 0.0
        %1345 = vmatprep.subr.mxu0 0.0
        %1346 = vmatpush1.msra.mxu0 0.0
        %1347 = vmatprep.subr.mxu0 0.0
        %1348 = vmatpush1.msra.mxu0 0.0
        %1349 = vmatprep.subr.mxu0 0.0
        %1350 = vmatpush1.msra.mxu0 0.0
        %1351 = vmatprep.subr.mxu0 0.0
        %1352 = vmatpush1.msra.mxu0 0.0
        %1353 = vmatprep.subr.mxu0 0.0
        %1354 = vmatpush1.msra.mxu0 %v1313
        %1355 = vmatprep.subr.mxu0 0.0
        %1356 = vmatpush1.msra.mxu0 %v1312
        %1357 = vmatprep.subr.mxu0 0.0
        %1358 = vmatpush1.msra.mxu0 %v1311
        %1359 = vmatprep.subr.mxu0 0.0
        %1360 = vmatpush1.msra.mxu0 %v1310
        %1361 = vmatprep.subr.mxu0 0.0
        %1362 = vmatpush2.msra.mxu0 0.0
        %1363 = vmatprep.subr.mxu0 0.0
        %1364 = vmatpush2.msra.mxu0 0.0
        %1365 = vmatprep.subr.mxu0 0.0
        %1366 = vmatpush2.msra.mxu0 0.0
        %1367 = vmatprep.subr.mxu0 0.0
        %1368 = vmatpush2.msra.mxu0 0.0
        %1369 = vmatprep.subr.mxu0 0.0
        %1370 = vmatpush2.msra.mxu0 0.0
        %1371 = vmatprep.subr.mxu0 0.0
        %1372 = vmatpush2.msra.mxu0 0.0
        %1373 = vmatprep.subr.mxu0 0.0
        %1374 = vmatpush2.msra.mxu0 0.0
        %1375 = vmatprep.subr.mxu0 0.0
        %1376 = vmatpush2.msra.mxu0 0.0
        %1377 = vmatprep.subr.mxu0 0.0
        %1378 = vmatpush2.msra.mxu0 0.0
        %1379 = vmatprep.subr.mxu0 0.0
        %1380 = vmatpush2.msra.mxu0 0.0
        %1381 = vmatprep.subr.mxu0 0.0
        %1382 = vmatpush2.msra.mxu0 0.0
        %1383 = vmatprep.subr.mxu0 0.0
        %1384 = vmatpush2.msra.mxu0 0.0
        %1385 = vmatprep.subr.mxu0 0.0
        %1386 = vmatpush2.msra.mxu0 0.0
        %1387 = vmatprep.subr.mxu0 0.0
        %1388 = vmatpush2.msra.mxu0 0.0
        %1389 = vmatprep.subr.mxu0 0.0
        %1390 = vmatpush2.msra.mxu0 0.0
        %1391 = vmatprep.subr.mxu0 0.0
        %1392 = vmatpush2.msra.mxu0 0.0
        %1393 = vmatprep.mubr.f32.mxu0 0.0
        %1394 = vmatmul.mubr.f32.gmra.mxu0 %v1324
        %v1395 = vpop.f32.mrf.mxu0
        %v1396 = vadd.f32 %v1317, %v1395
        %v1397 = vpop.f32.mrf.mxu0
        %1398 = vmatprep.mubr.f32.mxu0 0.0
        %1399 = vmatmul.mubr.f32.gmra.mxu0 %v1327
        %v1400 = vpop.f32.mrf.mxu0
        %v1401 = vadd.f32 %v1319, %v1400
        %v1402 = vpop.f32.mrf.mxu0
        %1403 = vdwg.mxu0
        %1405 = vset.pattern.permute.xlu0 0
        %1406 = vperm.xlu0 %1405, %v1396
        %v1407 = vpop.permute.xlu0 %1406
        %1410 = vset.pattern.permute.xlu0 0
        %1411 = vperm.xlu0 %1410, %v1401
        %v1412 = vpop.permute.xlu0 %1411
        %v1414 = vadd.f32 %v1290, %v1407
        %v1415 = vadd.f32 %v1291, %v1407
        %v1416 = vadd.f32 %v1292, %v1412
        %v1417 = vadd.f32 %v1293, %v1412
        %v1418 = vadd.f32 %v1414, %v1415
        %1419 = vadd.xlane.f32.xlu0 %v1418
        %v1420 = vpop.xlane.xlu0 %1419
        %v1421 = vadd.f32 %v1416, %v1417
        %1422 = vadd.xlane.f32.xlu0 %v1421
        %v1423 = vpop.xlane.xlu0 %1422
        %v1424 = vmul.f32 %v1414, %v1414
        %v1425 = vmul.f32 %v1415, %v1415
        %v1426 = vmul.f32 %v1416, %v1416
        %v1427 = vmul.f32 %v1417, %v1417
        %v1428 = vadd.f32 %v1424, %v1425
        %1429 = vadd.xlane.f32.xlu0 %v1428
        %v1430 = vpop.xlane.xlu0 %1429
        %v1431 = vadd.f32 %v1426, %v1427
        %1432 = vadd.xlane.f32.xlu0 %v1431
        %v1433 = vpop.xlane.xlu0 %1432
        %v1434 = vsel %vm419, %v1420, %v1430
        %v1435 = vsel %vm419, %v1423, %v1433
        %v1436 = vld [vmem:[%s4] sm:$0xff]
        %v1437 = vld [vmem:[%s4 + $0x8] sm:$0xff]
        %vm1438 = vcmask 130048
        %v1440 = vsel %vm1438, %v1436, 0
        %v1443 = vsel %vm1438, %v1437, 0
        %1445 = vmatprep.subr.mxu0 0.0
        %1446 = vmatpush1.msra.mxu0 0.0
        %1447 = vmatprep.subr.mxu0 0.0
        %1448 = vmatpush1.msra.mxu0 0.0
        %1449 = vmatprep.subr.mxu0 0.0
        %1450 = vmatpush1.msra.mxu0 0.0
        %1451 = vmatprep.subr.mxu0 0.0
        %1452 = vmatpush1.msra.mxu0 0.0
        %1453 = vmatprep.subr.mxu0 0.0
        %1454 = vmatpush1.msra.mxu0 0.0
        %1455 = vmatprep.subr.mxu0 0.0
        %1456 = vmatpush1.msra.mxu0 0.0
        %1457 = vmatprep.subr.mxu0 0.0
        %1458 = vmatpush1.msra.mxu0 0.0
        %1459 = vmatprep.subr.mxu0 0.0
        %1460 = vmatpush1.msra.mxu0 0.0
        %1461 = vmatprep.subr.mxu0 0.0
        %1462 = vmatpush1.msra.mxu0 0.0
        %1463 = vmatprep.subr.mxu0 0.0
        %1464 = vmatpush1.msra.mxu0 0.0
        %1465 = vmatprep.subr.mxu0 0.0
        %1466 = vmatpush1.msra.mxu0 0.0
        %1467 = vmatprep.subr.mxu0 0.0
        %1468 = vmatpush1.msra.mxu0 0.0
        %1469 = vmatprep.subr.mxu0 0.0
        %1470 = vmatpush1.msra.mxu0 0.0
        %1471 = vmatprep.subr.mxu0 0.0
        %1472 = vmatpush1.msra.mxu0 0.0
        %1473 = vmatprep.subr.mxu0 0.0
        %1474 = vmatpush1.msra.mxu0 %v1435
        %1475 = vmatprep.subr.mxu0 0.0
        %1476 = vmatpush1.msra.mxu0 %v1434
        %1477 = vmatprep.subr.mxu0 0.0
        %1478 = vmatpush2.msra.mxu0 0.0
        %1479 = vmatprep.subr.mxu0 0.0
        %1480 = vmatpush2.msra.mxu0 0.0
        %1481 = vmatprep.subr.mxu0 0.0
        %1482 = vmatpush2.msra.mxu0 0.0
        %1483 = vmatprep.subr.mxu0 0.0
        %1484 = vmatpush2.msra.mxu0 0.0
        %1485 = vmatprep.subr.mxu0 0.0
        %1486 = vmatpush2.msra.mxu0 0.0
        %1487 = vmatprep.subr.mxu0 0.0
        %1488 = vmatpush2.msra.mxu0 0.0
        %1489 = vmatprep.subr.mxu0 0.0
        %1490 = vmatpush2.msra.mxu0 0.0
        %1491 = vmatprep.subr.mxu0 0.0
        %1492 = vmatpush2.msra.mxu0 0.0
        %1493 = vmatprep.subr.mxu0 0.0
        %1494 = vmatpush2.msra.mxu0 0.0
        %1495 = vmatprep.subr.mxu0 0.0
        %1496 = vmatpush2.msra.mxu0 0.0
        %1497 = vmatprep.subr.mxu0 0.0
        %1498 = vmatpush2.msra.mxu0 0.0
        %1499 = vmatprep.subr.mxu0 0.0
        %1500 = vmatpush2.msra.mxu0 0.0
        %1501 = vmatprep.subr.mxu0 0.0
        %1502 = vmatpush2.msra.mxu0 0.0
        %1503 = vmatprep.subr.mxu0 0.0
        %1504 = vmatpush2.msra.mxu0 0.0
        %1505 = vmatprep.subr.mxu0 0.0
        %1506 = vmatpush2.msra.mxu0 0.0
        %1507 = vmatprep.subr.mxu0 0.0
        %1508 = vmatpush2.msra.mxu0 0.0
        %1509 = vmatprep.mubr.f32.mxu0 0.0
        %1510 = vmatmul.mubr.f32.gmra.mxu0 %v1440
        %v1511 = vpop.f32.mrf.mxu0
        %v1512 = vadd.f32 0.0, %v1511
        %v1513 = vpop.f32.mrf.mxu0
        %1514 = vmatprep.mubr.f32.mxu0 0.0
        %1515 = vmatmul.mubr.f32.gmra.mxu0 %v1443
        %v1516 = vpop.f32.mrf.mxu0
        %v1517 = vadd.f32 0.0, %v1516
        %v1518 = vpop.f32.mrf.mxu0
        %1519 = vdwg.mxu0
        %v1520 = vmul.f32 %v1512, %v1512
        %v1521 = vmul.f32 %v1517, %v1517
        %1524 = vrot.lane.b32.xlu0 %v1520, 1
        %v1525 = vpop.permute.xlu0 %1524
        %1526 = vrot.lane.b32.xlu0 %v1521, 1
        %v1527 = vpop.permute.xlu0 %1526
        %v1530 = vsub.f32 %v1512, %v1525
        %v1531 = vsub.f32 %v1517, %v1527
        %v1532 = vmax.f32 %v1530, 0.0
        %v1533 = vmax.f32 %v1531, 0.0
        %v1534 = vadd.f32 %v1532, 1e-05
        %v1535 = vadd.f32 %v1533, 1e-05
        %v1536 = vrsqrt.pop %v1534
        %v1537 = vrsqrt.pop %v1535
        %1539 = vset.pattern.permute.xlu0 0
        %1540 = vperm.xlu0 %1539, %v1512
        %v1541 = vpop.permute.xlu0 %1540
        %1544 = vset.pattern.permute.xlu0 0
        %1545 = vperm.xlu0 %1544, %v1517
        %v1546 = vpop.permute.xlu0 %1545
        %v1548 = vsub.f32 %v1414, %v1541
        %v1549 = vsub.f32 %v1415, %v1541
        %v1550 = vsub.f32 %v1416, %v1546
        %v1551 = vsub.f32 %v1417, %v1546
        %1553 = vset.pattern.permute.xlu0 1
        %1554 = vperm.xlu0 %1553, %v1536
        %v1555 = vpop.permute.xlu0 %1554
        %1558 = vset.pattern.permute.xlu0 1
        %1559 = vperm.xlu0 %1558, %v1537
        %v1560 = vpop.permute.xlu0 %1559
        %v1562 = vmul.f32 %v1548, %v1555
        %v1563 = vmul.f32 %v1549, %v1555
        %v1564 = vmul.f32 %v1550, %v1560
        %v1565 = vmul.f32 %v1551, %v1560
        %1566 = vset.pattern.permute.xlu0 2
        %1567 = vperm.xlu0 %1566, %v409
        %v1568 = vpop.permute.xlu0 %1567
        %1570 = vset.pattern.permute.xlu0 2
        %1571 = vperm.xlu0 %1570, %v410
        %v1572 = vpop.permute.xlu0 %1571
        %v1574 = vmul.f32 %v1562, %v1568
        %v1575 = vmul.f32 %v1563, %v1568
        %v1576 = vmul.f32 %v1564, %v1572
        %v1577 = vmul.f32 %v1565, %v1572
        %1578 = vset.pattern.permute.xlu0 3
        %1579 = vperm.xlu0 %1578, %v409
        %v1580 = vpop.permute.xlu0 %1579
        %1582 = vset.pattern.permute.xlu0 3
        %1583 = vperm.xlu0 %1582, %v410
        %v1584 = vpop.permute.xlu0 %1583
        %v1586 = vadd.f32 %v1574, %v1580
        %v1587 = vadd.f32 %v1575, %v1580
        %v1588 = vadd.f32 %v1576, %v1584
        %v1589 = vadd.f32 %v1577, %v1584
        %v1590 = vmul.f32 %v1586, 0.5
        %v1591 = vmul.f32 %v1587, 0.5
        %v1592 = vmul.f32 %v1588, 0.5
        %v1593 = vmul.f32 %v1589, 0.5
        %v1594 = vtanh.pop %v1590
        %v1595 = vtanh.pop %v1591
        %v1596 = vtanh.pop %v1592
        %v1597 = vtanh.pop %v1593
        %v1598 = vadd.f32 %v1594, 1.0
        %v1599 = vadd.f32 %v1595, 1.0
        %v1600 = vadd.f32 %v1596, 1.0
        %v1601 = vadd.f32 %v1597, 1.0
        %v1602 = vmul.f32 %v1590, %v1598
        %v1603 = vmul.f32 %v1591, %v1599
        %v1604 = vmul.f32 %v1592, %v1600
        %v1605 = vmul.f32 %v1593, %v1601
        %v1606 = vpack.c.bf16 %v1604, %v1602
        %v1607 = vpack.c.bf16 %v1605, %v1603
        %1610 = vrot.lane.b32.xlu0 %v1606, 17
        %v1611 = vpop.permute.xlu0 %1610
        %1612 = vrot.lane.b32.xlu0 %v1607, 17
        %v1613 = vpop.permute.xlu0 %1612
        %v1614 = vsel %vm548, %v1611, %v1613
        %v1617 = vsel %vm551, 0, %v1611
        %v1620 = vsel %vm551, %v1613, 0
        %v1622 = vmul.bf16 %v1617, %v590
        %v1623 = vmul.bf16 %v1614, %v597
        %v1624 = vmul.bf16 %v1620, %v604
        %v1625 = vmul.bf16 %v1617, %v614
        %v1626 = vmul.bf16 %v1614, %v621
        %v1627 = vmul.bf16 %v1620, %v628
        %v1628 = vld [vmem:[%s9] sm:$0xf]
        %v1629 = vld [vmem:[%s9 + $0x4] sm:$0xf]
        %s1630 = scalar_lea.vmem %s9, 8
        %v1631 = vld [vmem:[%s1630] sm:$0xf]
        %v1632 = vld [vmem:[%s1630 + $0x4] sm:$0xf]
        %v1635 = vunpack.c.l.b16 %v1631
        %v1636 = vunpack.c.l.b16 %v1632
        %v1637 = vpack.c.b16 %v1636, %v1635
        %1640 = vrot.lane.b32.xlu0 %v1617, 127
        %v1641 = vpop.permute.xlu0 %1640
        %1642 = vrot.lane.b32.xlu0 %v1614, 127
        %v1643 = vpop.permute.xlu0 %1642
        %1644 = vrot.lane.b32.xlu0 %v1620, 127
        %v1645 = vpop.permute.xlu0 %1644
        %v1646 = vsel %vm650, %v1641, %v1643
        %v1647 = vsel %vm650, %v1643, %v1645
        %v1651 = vsel %vm1438, %v1637, 0
        %1653 = vmatprep.subr.bf16.mxu0 0
        %1654 = vmatpush1.bf16.msra.mxu0 0
        %1655 = vmatprep.subr.bf16.mxu0 0
        %1656 = vmatpush1.bf16.msra.mxu0 0
        %1657 = vmatprep.subr.bf16.mxu0 0
        %1658 = vmatpush1.bf16.msra.mxu0 0
        %1659 = vmatprep.subr.bf16.mxu0 0
        %1660 = vmatpush1.bf16.msra.mxu0 0
        %1661 = vmatprep.subr.bf16.mxu0 0
        %1662 = vmatpush1.bf16.msra.mxu0 0
        %1663 = vmatprep.subr.bf16.mxu0 0
        %1664 = vmatpush1.bf16.msra.mxu0 0
        %1665 = vmatprep.subr.bf16.mxu0 0
        %1666 = vmatpush1.bf16.msra.mxu0 0
        %1667 = vmatprep.subr.bf16.mxu0 %v1647
        %1668 = vmatpush1.bf16.msra.mxu0 %v1646
        %1669 = vmatprep.subr.bf16.mxu0 0
        %1670 = vmatpush2.bf16.msra.mxu0 0
        %1671 = vmatprep.subr.bf16.mxu0 0
        %1672 = vmatpush2.bf16.msra.mxu0 0
        %1673 = vmatprep.subr.bf16.mxu0 0
        %1674 = vmatpush2.bf16.msra.mxu0 0
        %1675 = vmatprep.subr.bf16.mxu0 0
        %1676 = vmatpush2.bf16.msra.mxu0 0
        %1677 = vmatprep.subr.bf16.mxu0 0
        %1678 = vmatpush2.bf16.msra.mxu0 0
        %1679 = vmatprep.subr.bf16.mxu0 0
        %1680 = vmatpush2.bf16.msra.mxu0 0
        %1681 = vmatprep.subr.bf16.mxu0 0
        %1682 = vmatpush2.bf16.msra.mxu0 0
        %1683 = vmatprep.subr.bf16.mxu0 0
        %1684 = vmatpush2.bf16.msra.mxu0 0
        %1685 = vmatprep.mubr.bf16.mxu0 0
        %1686 = vmatmul.mubr.bf16.gmra.mxu0 %v1651
        %v1687 = vpop.f32.mrf.mxu0
        %v1688 = vadd.f32 0.0, %v1687
        %v1689 = vpop.f32.mrf.mxu0
        %v1690 = vadd.f32 0.0, %v1689
        %v1691 = vpop.f32.mrf.mxu0
        %v1692 = vadd.f32 0.0, %v1691
        %v1693 = vpop.f32.mrf.mxu0
        %v1694 = vadd.f32 0.0, %v1693
        %1695 = vdwg.mxu0
        %v1698 = vunpack.c.l.b16 %v1628
        %v1699 = vunpack.c.l.b16 %v1629
        %v1700 = vpack.c.b16 %v1699, %v1698
        %v1702 = vsel %vm1438, %v1700, 0
        %1704 = vmatprep.subr.bf16.mxu0 0
        %1705 = vmatpush1.bf16.msra.mxu0 0
        %1706 = vmatprep.subr.bf16.mxu0 0
        %1707 = vmatpush1.bf16.msra.mxu0 0
        %1708 = vmatprep.subr.bf16.mxu0 0
        %1709 = vmatpush1.bf16.msra.mxu0 0
        %1710 = vmatprep.subr.bf16.mxu0 0
        %1711 = vmatpush1.bf16.msra.mxu0 0
        %1712 = vmatprep.subr.bf16.mxu0 0
        %1713 = vmatpush1.bf16.msra.mxu0 0
        %1714 = vmatprep.subr.bf16.mxu0 0
        %1715 = vmatpush1.bf16.msra.mxu0 0
        %1716 = vmatprep.subr.bf16.mxu0 0
        %1717 = vmatpush1.bf16.msra.mxu0 0
        %1718 = vmatprep.subr.bf16.mxu0 %v1623
        %1719 = vmatpush1.bf16.msra.mxu0 %v1622
        %1720 = vmatprep.subr.bf16.mxu0 0
        %1721 = vmatpush2.bf16.msra.mxu0 0
        %1722 = vmatprep.subr.bf16.mxu0 0
        %1723 = vmatpush2.bf16.msra.mxu0 0
        %1724 = vmatprep.subr.bf16.mxu0 0
        %1725 = vmatpush2.bf16.msra.mxu0 0
        %1726 = vmatprep.subr.bf16.mxu0 0
        %1727 = vmatpush2.bf16.msra.mxu0 0
        %1728 = vmatprep.subr.bf16.mxu0 0
        %1729 = vmatpush2.bf16.msra.mxu0 0
        %1730 = vmatprep.subr.bf16.mxu0 0
        %1731 = vmatpush2.bf16.msra.mxu0 0
        %1732 = vmatprep.subr.bf16.mxu0 0
        %1733 = vmatpush2.bf16.msra.mxu0 0
        %1734 = vmatprep.subr.bf16.mxu0 0
        %1735 = vmatpush2.bf16.msra.mxu0 0
        %1736 = vmatprep.mubr.bf16.mxu0 0
        %1737 = vmatmul.mubr.bf16.gmra.mxu0 %v1702
        %v1738 = vpop.f32.mrf.mxu0
        %v1739 = vadd.f32 %v1688, %v1738
        %v1740 = vpop.f32.mrf.mxu0
        %v1741 = vadd.f32 %v1690, %v1740
        %v1742 = vpop.f32.mrf.mxu0
        %v1743 = vadd.f32 %v1692, %v1742
        %v1744 = vpop.f32.mrf.mxu0
        %v1745 = vadd.f32 %v1694, %v1744
        %1746 = vdwg.mxu0
        %s1747 = scalar_lea.vmem %s9, 16
        %v1748 = vld [vmem:[%s1747] sm:$0xf]
        %v1749 = vld [vmem:[%s1747 + $0x4] sm:$0xf]
        %v1752 = vunpack.c.l.b16 %v1748
        %v1753 = vunpack.c.l.b16 %v1749
        %v1754 = vpack.c.b16 %v1753, %v1752
        %1758 = vrot.lane.b32.xlu0 %v1625, 126
        %v1759 = vpop.permute.xlu0 %1758
        %1760 = vrot.lane.b32.xlu0 %v1626, 126
        %v1761 = vpop.permute.xlu0 %1760
        %1762 = vrot.lane.b32.xlu0 %v1627, 126
        %v1763 = vpop.permute.xlu0 %1762
        %v1764 = vsel %vm780, %v1759, %v1761
        %v1765 = vsel %vm780, %v1761, %v1763
        %v1769 = vsel %vm1438, %v1754, 0
        %1771 = vmatprep.subr.bf16.mxu0 0
        %1772 = vmatpush1.bf16.msra.mxu0 0
        %1773 = vmatprep.subr.bf16.mxu0 0
        %1774 = vmatpush1.bf16.msra.mxu0 0
        %1775 = vmatprep.subr.bf16.mxu0 0
        %1776 = vmatpush1.bf16.msra.mxu0 0
        %1777 = vmatprep.subr.bf16.mxu0 0
        %1778 = vmatpush1.bf16.msra.mxu0 0
        %1779 = vmatprep.subr.bf16.mxu0 0
        %1780 = vmatpush1.bf16.msra.mxu0 0
        %1781 = vmatprep.subr.bf16.mxu0 0
        %1782 = vmatpush1.bf16.msra.mxu0 0
        %1783 = vmatprep.subr.bf16.mxu0 0
        %1784 = vmatpush1.bf16.msra.mxu0 0
        %1785 = vmatprep.subr.bf16.mxu0 %v1765
        %1786 = vmatpush1.bf16.msra.mxu0 %v1764
        %1787 = vmatprep.subr.bf16.mxu0 0
        %1788 = vmatpush2.bf16.msra.mxu0 0
        %1789 = vmatprep.subr.bf16.mxu0 0
        %1790 = vmatpush2.bf16.msra.mxu0 0
        %1791 = vmatprep.subr.bf16.mxu0 0
        %1792 = vmatpush2.bf16.msra.mxu0 0
        %1793 = vmatprep.subr.bf16.mxu0 0
        %1794 = vmatpush2.bf16.msra.mxu0 0
        %1795 = vmatprep.subr.bf16.mxu0 0
        %1796 = vmatpush2.bf16.msra.mxu0 0
        %1797 = vmatprep.subr.bf16.mxu0 0
        %1798 = vmatpush2.bf16.msra.mxu0 0
        %1799 = vmatprep.subr.bf16.mxu0 0
        %1800 = vmatpush2.bf16.msra.mxu0 0
        %1801 = vmatprep.subr.bf16.mxu0 0
        %1802 = vmatpush2.bf16.msra.mxu0 0
        %1803 = vmatprep.mubr.bf16.mxu0 0
        %1804 = vmatmul.mubr.bf16.gmra.mxu0 %v1769
        %v1805 = vpop.f32.mrf.mxu0
        %v1806 = vadd.f32 0.0, %v1805
        %v1807 = vpop.f32.mrf.mxu0
        %v1808 = vadd.f32 0.0, %v1807
        %v1809 = vpop.f32.mrf.mxu0
        %v1810 = vadd.f32 0.0, %v1809
        %v1811 = vpop.f32.mrf.mxu0
        %v1812 = vadd.f32 0.0, %v1811
        %1813 = vdwg.mxu0
        %v1814 = vadd.f32 %v1739, %v1806
        %v1815 = vadd.f32 %v1741, %v1808
        %v1816 = vadd.f32 %v1743, %v1810
        %v1817 = vadd.f32 %v1745, %v1812
        %s1818 = scalar_lea.vmem %s9, 24
        %v1819 = vld [vmem:[%s1818] sm:$0xf]
        %v1820 = vld [vmem:[%s1818 + $0x4] sm:$0xf]
        %v1823 = vunpack.c.l.b16 %v1819
        %v1824 = vunpack.c.l.b16 %v1820
        %v1825 = vpack.c.b16 %v1824, %v1823
        %1829 = vrot.lane.b32.xlu0 %v1622, 112
        %v1830 = vpop.permute.xlu0 %1829
        %1831 = vrot.lane.b32.xlu0 %v1623, 112
        %v1832 = vpop.permute.xlu0 %1831
        %1833 = vrot.lane.b32.xlu0 %v1624, 112
        %v1834 = vpop.permute.xlu0 %1833
        %v1835 = vsel %vm856, %v1830, %v1832
        %v1836 = vsel %vm856, %v1832, %v1834
        %v1840 = vsel %vm1438, %v1825, 0
        %1842 = vmatprep.subr.bf16.mxu0 0
        %1843 = vmatpush1.bf16.msra.mxu0 0
        %1844 = vmatprep.subr.bf16.mxu0 0
        %1845 = vmatpush1.bf16.msra.mxu0 0
        %1846 = vmatprep.subr.bf16.mxu0 0
        %1847 = vmatpush1.bf16.msra.mxu0 0
        %1848 = vmatprep.subr.bf16.mxu0 0
        %1849 = vmatpush1.bf16.msra.mxu0 0
        %1850 = vmatprep.subr.bf16.mxu0 0
        %1851 = vmatpush1.bf16.msra.mxu0 0
        %1852 = vmatprep.subr.bf16.mxu0 0
        %1853 = vmatpush1.bf16.msra.mxu0 0
        %1854 = vmatprep.subr.bf16.mxu0 0
        %1855 = vmatpush1.bf16.msra.mxu0 0
        %1856 = vmatprep.subr.bf16.mxu0 %v1836
        %1857 = vmatpush1.bf16.msra.mxu0 %v1835
        %1858 = vmatprep.subr.bf16.mxu0 0
        %1859 = vmatpush2.bf16.msra.mxu0 0
        %1860 = vmatprep.subr.bf16.mxu0 0
        %1861 = vmatpush2.bf16.msra.mxu0 0
        %1862 = vmatprep.subr.bf16.mxu0 0
        %1863 = vmatpush2.bf16.msra.mxu0 0
        %1864 = vmatprep.subr.bf16.mxu0 0
        %1865 = vmatpush2.bf16.msra.mxu0 0
        %1866 = vmatprep.subr.bf16.mxu0 0
        %1867 = vmatpush2.bf16.msra.mxu0 0
        %1868 = vmatprep.subr.bf16.mxu0 0
        %1869 = vmatpush2.bf16.msra.mxu0 0
        %1870 = vmatprep.subr.bf16.mxu0 0
        %1871 = vmatpush2.bf16.msra.mxu0 0
        %1872 = vmatprep.subr.bf16.mxu0 0
        %1873 = vmatpush2.bf16.msra.mxu0 0
        %1874 = vmatprep.mubr.bf16.mxu0 0
        %1875 = vmatmul.mubr.bf16.gmra.mxu0 %v1840
        %v1876 = vpop.f32.mrf.mxu0
        %v1877 = vadd.f32 0.0, %v1876
        %v1878 = vpop.f32.mrf.mxu0
        %v1879 = vadd.f32 0.0, %v1878
        %v1880 = vpop.f32.mrf.mxu0
        %v1881 = vadd.f32 0.0, %v1880
        %v1882 = vpop.f32.mrf.mxu0
        %v1883 = vadd.f32 0.0, %v1882
        %1884 = vdwg.mxu0
        %v1885 = vadd.f32 %v1814, %v1877
        %v1886 = vadd.f32 %v1815, %v1879
        %v1887 = vadd.f32 %v1816, %v1881
        %v1888 = vadd.f32 %v1817, %v1883
        %s1889 = scalar_lea.vmem %s9, 32
        %v1890 = vld [vmem:[%s1889] sm:$0xf]
        %v1891 = vld [vmem:[%s1889 + $0x4] sm:$0xf]
        %v1894 = vunpack.c.l.b16 %v1890
        %v1895 = vunpack.c.l.b16 %v1891
        %v1896 = vpack.c.b16 %v1895, %v1894
        %1897 = vrot.lane.b32.xlu0 %v1617, 111
        %v1898 = vpop.permute.xlu0 %1897
        %1899 = vrot.lane.b32.xlu0 %v1614, 111
        %v1900 = vpop.permute.xlu0 %1899
        %1901 = vrot.lane.b32.xlu0 %v1620, 111
        %v1902 = vpop.permute.xlu0 %1901
        %v1903 = vsel %vm929, %v1898, %v1900
        %v1904 = vsel %vm929, %v1900, %v1902
        %v1908 = vsel %vm1438, %v1896, 0
        %1910 = vmatprep.subr.bf16.mxu0 0
        %1911 = vmatpush1.bf16.msra.mxu0 0
        %1912 = vmatprep.subr.bf16.mxu0 0
        %1913 = vmatpush1.bf16.msra.mxu0 0
        %1914 = vmatprep.subr.bf16.mxu0 0
        %1915 = vmatpush1.bf16.msra.mxu0 0
        %1916 = vmatprep.subr.bf16.mxu0 0
        %1917 = vmatpush1.bf16.msra.mxu0 0
        %1918 = vmatprep.subr.bf16.mxu0 0
        %1919 = vmatpush1.bf16.msra.mxu0 0
        %1920 = vmatprep.subr.bf16.mxu0 0
        %1921 = vmatpush1.bf16.msra.mxu0 0
        %1922 = vmatprep.subr.bf16.mxu0 0
        %1923 = vmatpush1.bf16.msra.mxu0 0
        %1924 = vmatprep.subr.bf16.mxu0 %v1904
        %1925 = vmatpush1.bf16.msra.mxu0 %v1903
        %1926 = vmatprep.subr.bf16.mxu0 0
        %1927 = vmatpush2.bf16.msra.mxu0 0
        %1928 = vmatprep.subr.bf16.mxu0 0
        %1929 = vmatpush2.bf16.msra.mxu0 0
        %1930 = vmatprep.subr.bf16.mxu0 0
        %1931 = vmatpush2.bf16.msra.mxu0 0
        %1932 = vmatprep.subr.bf16.mxu0 0
        %1933 = vmatpush2.bf16.msra.mxu0 0
        %1934 = vmatprep.subr.bf16.mxu0 0
        %1935 = vmatpush2.bf16.msra.mxu0 0
        %1936 = vmatprep.subr.bf16.mxu0 0
        %1937 = vmatpush2.bf16.msra.mxu0 0
        %1938 = vmatprep.subr.bf16.mxu0 0
        %1939 = vmatpush2.bf16.msra.mxu0 0
        %1940 = vmatprep.subr.bf16.mxu0 0
        %1941 = vmatpush2.bf16.msra.mxu0 0
        %1942 = vmatprep.mubr.bf16.mxu0 0
        %1943 = vmatmul.mubr.bf16.gmra.mxu0 %v1908
        %v1944 = vpop.f32.mrf.mxu0
        %v1945 = vadd.f32 0.0, %v1944
        %v1946 = vpop.f32.mrf.mxu0
        %v1947 = vadd.f32 0.0, %v1946
        %v1948 = vpop.f32.mrf.mxu0
        %v1949 = vadd.f32 0.0, %v1948
        %v1950 = vpop.f32.mrf.mxu0
        %v1951 = vadd.f32 0.0, %v1950
        %1952 = vdwg.mxu0
        %v1953 = vadd.f32 %v1885, %v1945
        %v1954 = vadd.f32 %v1886, %v1947
        %v1955 = vadd.f32 %v1887, %v1949
        %v1956 = vadd.f32 %v1888, %v1951
        %s1957 = scalar_lea.vmem %s9, 40
        %v1958 = vld [vmem:[%s1957] sm:$0xf]
        %v1959 = vld [vmem:[%s1957 + $0x4] sm:$0xf]
        %v1962 = vunpack.c.l.b16 %v1958
        %v1963 = vunpack.c.l.b16 %v1959
        %v1964 = vpack.c.b16 %v1963, %v1962
        %1965 = vrot.lane.b32.xlu0 %v1625, 110
        %v1966 = vpop.permute.xlu0 %1965
        %1967 = vrot.lane.b32.xlu0 %v1626, 110
        %v1968 = vpop.permute.xlu0 %1967
        %1969 = vrot.lane.b32.xlu0 %v1627, 110
        %v1970 = vpop.permute.xlu0 %1969
        %v1971 = vsel %vm1002, %v1966, %v1968
        %v1972 = vsel %vm1002, %v1968, %v1970
        %v1976 = vsel %vm1438, %v1964, 0
        %1978 = vmatprep.subr.bf16.mxu0 0
        %1979 = vmatpush1.bf16.msra.mxu0 0
        %1980 = vmatprep.subr.bf16.mxu0 0
        %1981 = vmatpush1.bf16.msra.mxu0 0
        %1982 = vmatprep.subr.bf16.mxu0 0
        %1983 = vmatpush1.bf16.msra.mxu0 0
        %1984 = vmatprep.subr.bf16.mxu0 0
        %1985 = vmatpush1.bf16.msra.mxu0 0
        %1986 = vmatprep.subr.bf16.mxu0 0
        %1987 = vmatpush1.bf16.msra.mxu0 0
        %1988 = vmatprep.subr.bf16.mxu0 0
        %1989 = vmatpush1.bf16.msra.mxu0 0
        %1990 = vmatprep.subr.bf16.mxu0 0
        %1991 = vmatpush1.bf16.msra.mxu0 0
        %1992 = vmatprep.subr.bf16.mxu0 %v1972
        %1993 = vmatpush1.bf16.msra.mxu0 %v1971
        %1994 = vmatprep.subr.bf16.mxu0 0
        %1995 = vmatpush2.bf16.msra.mxu0 0
        %1996 = vmatprep.subr.bf16.mxu0 0
        %1997 = vmatpush2.bf16.msra.mxu0 0
        %1998 = vmatprep.subr.bf16.mxu0 0
        %1999 = vmatpush2.bf16.msra.mxu0 0
        %2000 = vmatprep.subr.bf16.mxu0 0
        %2001 = vmatpush2.bf16.msra.mxu0 0
        %2002 = vmatprep.subr.bf16.mxu0 0
        %2003 = vmatpush2.bf16.msra.mxu0 0
        %2004 = vmatprep.subr.bf16.mxu0 0
        %2005 = vmatpush2.bf16.msra.mxu0 0
        %2006 = vmatprep.subr.bf16.mxu0 0
        %2007 = vmatpush2.bf16.msra.mxu0 0
        %2008 = vmatprep.subr.bf16.mxu0 0
        %2009 = vmatpush2.bf16.msra.mxu0 0
        %2010 = vmatprep.mubr.bf16.mxu0 0
        %2011 = vmatmul.mubr.bf16.gmra.mxu0 %v1976
        %v2012 = vpop.f32.mrf.mxu0
        %v2013 = vadd.f32 0.0, %v2012
        %v2014 = vpop.f32.mrf.mxu0
        %v2015 = vadd.f32 0.0, %v2014
        %v2016 = vpop.f32.mrf.mxu0
        %v2017 = vadd.f32 0.0, %v2016
        %v2018 = vpop.f32.mrf.mxu0
        %v2019 = vadd.f32 0.0, %v2018
        %2020 = vdwg.mxu0
        %v2021 = vadd.f32 %v1953, %v2013
        %v2022 = vadd.f32 %v1954, %v2015
        %v2023 = vadd.f32 %v1955, %v2017
        %v2024 = vadd.f32 %v1956, %v2019
        %s2025 = scalar_lea.vmem %s9, 48
        %v2026 = vld [vmem:[%s2025] sm:$0xf]
        %v2027 = vld [vmem:[%s2025 + $0x4] sm:$0xf]
        %v2030 = vunpack.c.l.b16 %v2026
        %v2031 = vunpack.c.l.b16 %v2027
        %v2032 = vpack.c.b16 %v2031, %v2030
        %2033 = vrot.lane.b32.xlu0 %v1622, 96
        %v2034 = vpop.permute.xlu0 %2033
        %2035 = vrot.lane.b32.xlu0 %v1623, 96
        %v2036 = vpop.permute.xlu0 %2035
        %2037 = vrot.lane.b32.xlu0 %v1624, 96
        %v2038 = vpop.permute.xlu0 %2037
        %v2039 = vsel %vm1075, %v2034, %v2036
        %v2040 = vsel %vm1075, %v2036, %v2038
        %v2044 = vsel %vm1438, %v2032, 0
        %2046 = vmatprep.subr.bf16.mxu0 0
        %2047 = vmatpush1.bf16.msra.mxu0 0
        %2048 = vmatprep.subr.bf16.mxu0 0
        %2049 = vmatpush1.bf16.msra.mxu0 0
        %2050 = vmatprep.subr.bf16.mxu0 0
        %2051 = vmatpush1.bf16.msra.mxu0 0
        %2052 = vmatprep.subr.bf16.mxu0 0
        %2053 = vmatpush1.bf16.msra.mxu0 0
        %2054 = vmatprep.subr.bf16.mxu0 0
        %2055 = vmatpush1.bf16.msra.mxu0 0
        %2056 = vmatprep.subr.bf16.mxu0 0
        %2057 = vmatpush1.bf16.msra.mxu0 0
        %2058 = vmatprep.subr.bf16.mxu0 0
        %2059 = vmatpush1.bf16.msra.mxu0 0
        %2060 = vmatprep.subr.bf16.mxu0 %v2040
        %2061 = vmatpush1.bf16.msra.mxu0 %v2039
        %2062 = vmatprep.subr.bf16.mxu0 0
        %2063 = vmatpush2.bf16.msra.mxu0 0
        %2064 = vmatprep.subr.bf16.mxu0 0
        %2065 = vmatpush2.bf16.msra.mxu0 0
        %2066 = vmatprep.subr.bf16.mxu0 0
        %2067 = vmatpush2.bf16.msra.mxu0 0
        %2068 = vmatprep.subr.bf16.mxu0 0
        %2069 = vmatpush2.bf16.msra.mxu0 0
        %2070 = vmatprep.subr.bf16.mxu0 0
        %2071 = vmatpush2.bf16.msra.mxu0 0
        %2072 = vmatprep.subr.bf16.mxu0 0
        %2073 = vmatpush2.bf16.msra.mxu0 0
        %2074 = vmatprep.subr.bf16.mxu0 0
        %2075 = vmatpush2.bf16.msra.mxu0 0
        %2076 = vmatprep.subr.bf16.mxu0 0
        %2077 = vmatpush2.bf16.msra.mxu0 0
        %2078 = vmatprep.mubr.bf16.mxu0 0
        %2079 = vmatmul.mubr.bf16.gmra.mxu0 %v2044
        %v2080 = vpop.f32.mrf.mxu0
        %v2081 = vadd.f32 0.0, %v2080
        %v2082 = vpop.f32.mrf.mxu0
        %v2083 = vadd.f32 0.0, %v2082
        %v2084 = vpop.f32.mrf.mxu0
        %v2085 = vadd.f32 0.0, %v2084
        %v2086 = vpop.f32.mrf.mxu0
        %v2087 = vadd.f32 0.0, %v2086
        %2088 = vdwg.mxu0
        %v2089 = vadd.f32 %v2021, %v2081
        %v2090 = vadd.f32 %v2022, %v2083
        %v2091 = vadd.f32 %v2023, %v2085
        %v2092 = vadd.f32 %v2024, %v2087
        %s2093 = scalar_lea.vmem %s9, 56
        %v2094 = vld [vmem:[%s2093] sm:$0xf]
        %v2095 = vld [vmem:[%s2093 + $0x4] sm:$0xf]
        %v2098 = vunpack.c.l.b16 %v2094
        %v2099 = vunpack.c.l.b16 %v2095
        %v2100 = vpack.c.b16 %v2099, %v2098
        %2101 = vrot.lane.b32.xlu0 %v1617, 95
        %v2102 = vpop.permute.xlu0 %2101
        %2103 = vrot.lane.b32.xlu0 %v1614, 95
        %v2104 = vpop.permute.xlu0 %2103
        %2105 = vrot.lane.b32.xlu0 %v1620, 95
        %v2106 = vpop.permute.xlu0 %2105
        %v2107 = vsel %vm1148, %v2102, %v2104
        %v2108 = vsel %vm1148, %v2104, %v2106
        %v2112 = vsel %vm1438, %v2100, 0
        %2114 = vmatprep.subr.bf16.mxu0 0
        %2115 = vmatpush1.bf16.msra.mxu0 0
        %2116 = vmatprep.subr.bf16.mxu0 0
        %2117 = vmatpush1.bf16.msra.mxu0 0
        %2118 = vmatprep.subr.bf16.mxu0 0
        %2119 = vmatpush1.bf16.msra.mxu0 0
        %2120 = vmatprep.subr.bf16.mxu0 0
        %2121 = vmatpush1.bf16.msra.mxu0 0
        %2122 = vmatprep.subr.bf16.mxu0 0
        %2123 = vmatpush1.bf16.msra.mxu0 0
        %2124 = vmatprep.subr.bf16.mxu0 0
        %2125 = vmatpush1.bf16.msra.mxu0 0
        %2126 = vmatprep.subr.bf16.mxu0 0
        %2127 = vmatpush1.bf16.msra.mxu0 0
        %2128 = vmatprep.subr.bf16.mxu0 %v2108
        %2129 = vmatpush1.bf16.msra.mxu0 %v2107
        %2130 = vmatprep.subr.bf16.mxu0 0
        %2131 = vmatpush2.bf16.msra.mxu0 0
        %2132 = vmatprep.subr.bf16.mxu0 0
        %2133 = vmatpush2.bf16.msra.mxu0 0
        %2134 = vmatprep.subr.bf16.mxu0 0
        %2135 = vmatpush2.bf16.msra.mxu0 0
        %2136 = vmatprep.subr.bf16.mxu0 0
        %2137 = vmatpush2.bf16.msra.mxu0 0
        %2138 = vmatprep.subr.bf16.mxu0 0
        %2139 = vmatpush2.bf16.msra.mxu0 0
        %2140 = vmatprep.subr.bf16.mxu0 0
        %2141 = vmatpush2.bf16.msra.mxu0 0
        %2142 = vmatprep.subr.bf16.mxu0 0
        %2143 = vmatpush2.bf16.msra.mxu0 0
        %2144 = vmatprep.subr.bf16.mxu0 0
        %2145 = vmatpush2.bf16.msra.mxu0 0
        %2146 = vmatprep.mubr.bf16.mxu0 0
        %2147 = vmatmul.mubr.bf16.gmra.mxu0 %v2112
        %v2148 = vpop.f32.mrf.mxu0
        %v2149 = vadd.f32 0.0, %v2148
        %v2150 = vpop.f32.mrf.mxu0
        %v2151 = vadd.f32 0.0, %v2150
        %v2152 = vpop.f32.mrf.mxu0
        %v2153 = vadd.f32 0.0, %v2152
        %v2154 = vpop.f32.mrf.mxu0
        %v2155 = vadd.f32 0.0, %v2154
        %2156 = vdwg.mxu0
        %v2157 = vadd.f32 %v2089, %v2149
        %v2158 = vadd.f32 %v2090, %v2151
        %v2159 = vadd.f32 %v2091, %v2153
        %v2160 = vadd.f32 %v2092, %v2155
        %s2161 = scalar_lea.vmem %s9, 64
        %v2162 = vld [vmem:[%s2161] sm:$0xf]
        %v2163 = vld [vmem:[%s2161 + $0x4] sm:$0xf]
        %v2166 = vunpack.c.l.b16 %v2162
        %v2167 = vunpack.c.l.b16 %v2163
        %v2168 = vpack.c.b16 %v2167, %v2166
        %2169 = vrot.lane.b32.xlu0 %v1625, 94
        %v2170 = vpop.permute.xlu0 %2169
        %2171 = vrot.lane.b32.xlu0 %v1626, 94
        %v2172 = vpop.permute.xlu0 %2171
        %2173 = vrot.lane.b32.xlu0 %v1627, 94
        %v2174 = vpop.permute.xlu0 %2173
        %v2175 = vsel %vm1221, %v2170, %v2172
        %v2176 = vsel %vm1221, %v2172, %v2174
        %v2180 = vsel %vm1438, %v2168, 0
        %2182 = vmatprep.subr.bf16.mxu0 0
        %2183 = vmatpush1.bf16.msra.mxu0 0
        %2184 = vmatprep.subr.bf16.mxu0 0
        %2185 = vmatpush1.bf16.msra.mxu0 0
        %2186 = vmatprep.subr.bf16.mxu0 0
        %2187 = vmatpush1.bf16.msra.mxu0 0
        %2188 = vmatprep.subr.bf16.mxu0 0
        %2189 = vmatpush1.bf16.msra.mxu0 0
        %2190 = vmatprep.subr.bf16.mxu0 0
        %2191 = vmatpush1.bf16.msra.mxu0 0
        %2192 = vmatprep.subr.bf16.mxu0 0
        %2193 = vmatpush1.bf16.msra.mxu0 0
        %2194 = vmatprep.subr.bf16.mxu0 0
        %2195 = vmatpush1.bf16.msra.mxu0 0
        %2196 = vmatprep.subr.bf16.mxu0 %v2176
        %2197 = vmatpush1.bf16.msra.mxu0 %v2175
        %2198 = vmatprep.subr.bf16.mxu0 0
        %2199 = vmatpush2.bf16.msra.mxu0 0
        %2200 = vmatprep.subr.bf16.mxu0 0
        %2201 = vmatpush2.bf16.msra.mxu0 0
        %2202 = vmatprep.subr.bf16.mxu0 0
        %2203 = vmatpush2.bf16.msra.mxu0 0
        %2204 = vmatprep.subr.bf16.mxu0 0
        %2205 = vmatpush2.bf16.msra.mxu0 0
        %2206 = vmatprep.subr.bf16.mxu0 0
        %2207 = vmatpush2.bf16.msra.mxu0 0
        %2208 = vmatprep.subr.bf16.mxu0 0
        %2209 = vmatpush2.bf16.msra.mxu0 0
        %2210 = vmatprep.subr.bf16.mxu0 0
        %2211 = vmatpush2.bf16.msra.mxu0 0
        %2212 = vmatprep.subr.bf16.mxu0 0
        %2213 = vmatpush2.bf16.msra.mxu0 0
        %2214 = vmatprep.mubr.bf16.mxu0 0
        %2215 = vmatmul.mubr.bf16.gmra.mxu0 %v2180
        %v2216 = vpop.f32.mrf.mxu0
        %v2217 = vadd.f32 0.0, %v2216
        %v2218 = vpop.f32.mrf.mxu0
        %v2219 = vadd.f32 0.0, %v2218
        %v2220 = vpop.f32.mrf.mxu0
        %v2221 = vadd.f32 0.0, %v2220
        %v2222 = vpop.f32.mrf.mxu0
        %v2223 = vadd.f32 0.0, %v2222
        %2224 = vdwg.mxu0
        %v2225 = vadd.f32 %v2157, %v2217
        %v2226 = vadd.f32 %v2158, %v2219
        %v2227 = vadd.f32 %v2159, %v2221
        %v2228 = vadd.f32 %v2160, %v2223
        %2229 = vset.pattern.permute.xlu0 4
        %2230 = vperm.xlu0 %2229, %v409
        %v2231 = vpop.permute.xlu0 %2230
        %2233 = vset.pattern.permute.xlu0 4
        %2234 = vperm.xlu0 %2233, %v410
        %v2235 = vpop.permute.xlu0 %2234
        %v2237 = vadd.f32 %v2225, %v2231
        %v2238 = vadd.f32 %v2226, %v2231
        %v2239 = vadd.f32 %v2227, %v2235
        %v2240 = vadd.f32 %v2228, %v2235
        %v2241 = vld [vmem:[%s10] sm:$0xf]
        %v2242 = vld [vmem:[%s10 + $0x4] sm:$0xf]
        %v2243 = vpack.c.bf16 %v406, %v406
        %v2244 = vpack.c.bf16 %v407, %v407
        %2245 = vset.pattern.permute.xlu0 5
        %2246 = vperm.xlu0 %2245, %v409
        %v2247 = vpop.permute.xlu0 %2246
        %2249 = vset.pattern.permute.xlu0 5
        %2250 = vperm.xlu0 %2249, %v410
        %v2251 = vpop.permute.xlu0 %2250
        %v2255 = vunpack.c.l.b16 %v2241
        %v2256 = vunpack.c.l.b16 %v2242
        %v2257 = vpack.c.b16 %v2256, %v2255
        %v2259 = vsel %vm422, %v2257, 0
        %v2262 = vsel %vm656, %v2243, 0
        %v2265 = vsel %vm656, %v2244, 0
        %2267 = vmatprep.subr.bf16.mxu0 0
        %2268 = vmatpush1.bf16.msra.mxu0 0
        %2269 = vmatprep.subr.bf16.mxu0 0
        %2270 = vmatpush1.bf16.msra.mxu0 0
        %2271 = vmatprep.subr.bf16.mxu0 0
        %2272 = vmatpush1.bf16.msra.mxu0 0
        %2273 = vmatprep.subr.bf16.mxu0 0
        %2274 = vmatpush1.bf16.msra.mxu0 0
        %2275 = vmatprep.subr.bf16.mxu0 0
        %2276 = vmatpush1.bf16.msra.mxu0 0
        %2277 = vmatprep.subr.bf16.mxu0 0
        %2278 = vmatpush1.bf16.msra.mxu0 0
        %2279 = vmatprep.subr.bf16.mxu0 0
        %2280 = vmatpush1.bf16.msra.mxu0 0
        %2281 = vmatprep.subr.bf16.mxu0 %v2265
        %2282 = vmatpush1.bf16.msra.mxu0 %v2262
        %2283 = vmatprep.subr.bf16.mxu0 0
        %2284 = vmatpush2.bf16.msra.mxu0 0
        %2285 = vmatprep.subr.bf16.mxu0 0
        %2286 = vmatpush2.bf16.msra.mxu0 0
        %2287 = vmatprep.subr.bf16.mxu0 0
        %2288 = vmatpush2.bf16.msra.mxu0 0
        %2289 = vmatprep.subr.bf16.mxu0 0
        %2290 = vmatpush2.bf16.msra.mxu0 0
        %2291 = vmatprep.subr.bf16.mxu0 0
        %2292 = vmatpush2.bf16.msra.mxu0 0
        %2293 = vmatprep.subr.bf16.mxu0 0
        %2294 = vmatpush2.bf16.msra.mxu0 0
        %2295 = vmatprep.subr.bf16.mxu0 0
        %2296 = vmatpush2.bf16.msra.mxu0 0
        %2297 = vmatprep.subr.bf16.mxu0 0
        %2298 = vmatpush2.bf16.msra.mxu0 0
        %2299 = vmatprep.mubr.bf16.mxu0 0
        %2300 = vmatmul.mubr.bf16.gmra.mxu0 %v2259
        %v2301 = vpop.f32.mrf.mxu0
        %v2302 = vadd.f32 %v2247, %v2301
        %v2303 = vpop.f32.mrf.mxu0
        %v2304 = vadd.f32 %v2247, %v2303
        %v2305 = vpop.f32.mrf.mxu0
        %v2306 = vadd.f32 %v2251, %v2305
        %v2307 = vpop.f32.mrf.mxu0
        %v2308 = vadd.f32 %v2251, %v2307
        %2309 = vdwg.mxu0
        %v2310 = vadd.f32 %v2237, %v2302
        %v2311 = vadd.f32 %v2238, %v2304
        %v2312 = vadd.f32 %v2239, %v2306
        %v2313 = vadd.f32 %v2240, %v2308
        %2314 = vst [vmem:[%s394] sm:$0xff] %v2310
        %2315 = vst [vmem:[%s394 + $0x8] sm:$0xff] %v2311
        %2316 = vst [vmem:[%s394 + $0x10] sm:$0xff] %v2312
        %2317 = vst [vmem:[%s394 + $0x18] sm:$0xff] %v2313
        %s2318 = sand.u32 %s274, 1
        %s2319 = scalar_lea.sflag [#allocation3], %s2318
        %s2320 = sand.u32 %s274, 1
        %s2321 = smul.addr %s2320, 32
        %s2322 = scalar_lea.vmem [#allocation2], %s2321
        // Predicated region
        $region65: #{tpu_custom_call.1} parent=63 // pred_check
          %p2323 = pneg %p284
        $region66: #{tpu_custom_call.1} parent=63 // pred_check_branch
          %2325 = sbr.rel (%p2323) target = $region68
        $region67: #{tpu_custom_call.1} parent=63 // pred_region
          %s2327 = ssub.s32 512, 512
          %2328 = vsyncadd %s2319, %s2327
          %s2329 = smul.addr %s25, 4
          %s2330 = smul.addr %s2329, 128
          %s2331 = scalar_lea.hbm %s11, %s2330
          %s2332 = sshll.u32 %s2322, 4
          %s2333 = int_to_ptr.vmem [resolvable:$true] %s2332
          %2338 = dma.vmem_to_hbm [thread:$0]  %s2333, 512, %s2331, %s2319, 256, 256, 16
        $region68: #{tpu_custom_call.1} parent=63 // pred_fallthru
          _
      $region64: #{tpu_custom_call.1} parent=5 // pred_fallthru
        _
      %p2339 = scmp.le.s32.totalorder 2, %s20
      // Predicated region
      $region69: #{tpu_custom_call.1} parent=5 // pred_check
        %p2340 = pneg %p2339
      $region70: #{tpu_custom_call.1} parent=5 // pred_check_branch
        %2342 = sbr.rel (%p2340) target = $region72
      $region71: #{tpu_custom_call.1} parent=5 // pred_region
        %s2343 = ssub.s32 %s20, 2
        // Predicated region
        $region73: #{tpu_custom_call.1} parent=71 // pred_check
          %p2344 = pneg %p290
        $region74: #{tpu_custom_call.1} parent=71 // pred_check_branch
          %2346 = sbr.rel (%p2344) target = $region76
        $region75: #{tpu_custom_call.1} parent=71 // pred_region
          %s2347 = sand.u32 %s275, 1
          %s2348 = scalar_lea.sflag [#allocation3], %s2347
          %s2349 = sand.u32 %s275, 1
          %s2350 = smul.addr %s2349, 32
          %s2351 = scalar_lea.vmem [#allocation2], %s2350
          %2352 = dma.done %s2348, 512
        $region76: #{tpu_custom_call.1} parent=71 // pred_fallthru
          _
      $region72: #{tpu_custom_call.1} parent=5 // pred_fallthru
        _
    $region6: #{tpu_custom_call.1} parent=1 // loop_footer
      %s24 = sadd.s32 1, %s20
    $region7: #{tpu_custom_call.1} parent=1 // loop_footer_branch
      %19 = sbr.rel target = $region3
    $region8: #{tpu_custom_call.1} parent=1 // loop_exit
      _
    %2353 = vsyncpa [#allocation3], 1
    %s2354 = scalar_lea.sflag [#allocation3], 1
    %2355 = vsyncpa %s2354, 1

</llo_original>
